<compile_context>
chip_gen: v6e
topology: v6e:2x2x1
jax: 0.10.0
libtpu: 0.0.40
codegen_flags: <defaults>
</compile_context>

<pallas_src>
import functools

import jax
import jax.numpy as jnp
from jax import lax
from jax.experimental import pallas as pl
from jax.experimental.pallas import tpu as pltpu

# Fixed sizes from the module.
VOCABS = (9, 6, 4)          # per-coordinate embedding vocab sizes
HIDDEN = 32                 # per-coordinate embedding width
CAT = HIDDEN * 3            # 96 = concat width
FC = 256                    # first Linear width
VOCAB_PAD = 32              # 9 + 6 + 4 = 19, padded up (sublane friendly)


def _grid_encoder_kernel(idx_ref, w1f_ref, b1_ref, w2_ref, b2_ref, out_ref):
    idx = idx_ref[...]                                        # (TB, 3) int32
    tb = idx.shape[0]
    # Offset each coordinate into its disjoint row range of the fused weight.
    i0 = idx[:, 0:1]
    i1 = idx[:, 1:2] + VOCABS[0]
    i2 = idx[:, 2:3] + VOCABS[0] + VOCABS[1]
    lanes = lax.broadcasted_iota(jnp.int32, (tb, VOCAB_PAD), 1)
    multihot = ((lanes == i0) | (lanes == i1) | (lanes == i2)).astype(jnp.bfloat16)

    # Fused "gather + concat + Linear(96->256)": multihot @ (blockdiag @ W1).
    h = jnp.dot(multihot, w1f_ref[...], preferred_element_type=jnp.float32)
    h = jnp.maximum(h + b1_ref[...], 0.0)                     # bias + ReLU (f32 VPU)

    # Linear(256 -> embed_dim).
    o = jnp.dot(h.astype(jnp.bfloat16), w2_ref[...],
                preferred_element_type=jnp.float32)
    out_ref[...] = (o + b2_ref[...]).astype(out_ref.dtype)


def _round_up(n, m):
    return ((n + m - 1) // m) * m


@functools.partial(jax.jit, static_argnames=("block_rows",))
def grid_encoder(obs, tables, w1, b1, w2, b2, *, block_rows=512):
    """GridEncoder forward.

    obs:     (B, N, 3) integer grid coordinates (vocab 9 / 6 / 4 per column)
    tables:  tuple of 3 embedding tables, shapes (9,32), (6,32), (4,32)
    w1:      (96, 256)  (PyTorch Linear weight transposed), b1: (256,)
    w2:      (256, embed_dim),                              b2: (embed_dim,)
    returns: (B, N, embed_dim) float32
    """
    B, N, C = obs.shape
    assert C == 3
    embed_dim = w2.shape[1]
    M = B * N

    # Flatten (B, N) -> rows; pad rows up to a multiple of the tile size.
    tb = min(block_rows, _round_up(M, 8))
    m_pad = _round_up(M, tb)
    idx = obs.reshape(M, 3).astype(jnp.int32)
    if m_pad != M:
        idx = jnp.pad(idx, ((0, m_pad - M), (0, 0)))   # padded rows use index 0

    # One-time parameter transform (f32, outside the kernel):
    #   blockdiag table: rows [0,9) cols [0,32) = embedder 0
    #                    rows [9,15) cols [32,64) = embedder 1
    #                    rows [15,19) cols [64,96) = embedder 2
    #   then fold the first Linear:  W1f = blockdiag @ W1  -> (32, 256).
    tab = jnp.zeros((VOCAB_PAD, CAT), jnp.float32)
    tab = tab.at[0:9, 0:32].set(tables[0])
    tab = tab.at[9:15, 32:64].set(tables[1])
    tab = tab.at[15:19, 64:96].set(tables[2])
    w1f = tab @ w1                                     # (32, 256) f32

    # bf16 matmul operands (MXU-native, halves weight DMA); f32 biases.
    w1f_bf = w1f.astype(jnp.bfloat16)
    w2_bf = w2.astype(jnp.bfloat16)
    b1_2d = b1.reshape(1, FC).astype(jnp.float32)
    b2_2d = b2.reshape(1, embed_dim).astype(jnp.float32)

    grid = (m_pad // tb,)

    flops = 2 * m_pad * (VOCAB_PAD * FC + FC * embed_dim)
    bytes_accessed = (idx.size * 4 + w1f_bf.size * 2 + w2_bf.size * 2
                      + b1_2d.size * 4 + b2_2d.size * 4
                      + m_pad * embed_dim * 4)

    out = pl.pallas_call(
        _grid_encoder_kernel,
        out_shape=jax.ShapeDtypeStruct((m_pad, embed_dim), jnp.float32),
        grid=grid,
        in_specs=[
            pl.BlockSpec((tb, 3), lambda i: (i, 0)),             # indices: tiled
            pl.BlockSpec((VOCAB_PAD, FC), lambda i: (0, 0)),     # fused W1: resident
            pl.BlockSpec((1, FC), lambda i: (0, 0)),             # b1: resident
            pl.BlockSpec((FC, embed_dim), lambda i: (0, 0)),     # W2: resident
            pl.BlockSpec((1, embed_dim), lambda i: (0, 0)),      # b2: resident
        ],
        out_specs=pl.BlockSpec((tb, embed_dim), lambda i: (i, 0)),
        compiler_params=pltpu.CompilerParams(
            dimension_semantics=("parallel",),
        ),
        cost_estimate=pl.CostEstimate(
            flops=flops, transcendentals=0, bytes_accessed=bytes_accessed),
    )(idx, w1f_bf, b1_2d, w2_bf, b2_2d)

    return out[:M].reshape(B, N, embed_dim)


def _ref_forward(obs, tables, w1, b1, w2, b2):
    e = [tables[i][obs[..., i]] for i in range(3)]
    cat = jnp.concatenate(e, axis=-1)                    # (B, N, 96)
    h = jnp.maximum(cat @ w1 + b1, 0.0)                  # (B, N, 256)
    return h @ w2 + b2                                   # (B, N, embed_dim)


if __name__ == "__main__":
    B, N = 2, 256          # small, but big enough to exercise the batch grid
    embed_dim = 64

    key = jax.random.PRNGKey(0)
    keys = jax.random.split(key, 9)

    obs = jnp.stack([
        jax.random.randint(keys[0], (B, N), 0, VOCABS[0]),
        jax.random.randint(keys[1], (B, N), 0, VOCABS[1]),
        jax.random.randint(keys[2], (B, N), 0, VOCABS[2]),
    ], axis=-1).astype(jnp.int32)                        # (B, N, 3)

    tables = tuple(
        jax.random.normal(keys[3 + i], (VOCABS[i], HIDDEN), dtype=jnp.float32)
        for i in range(3))
    w1 = jax.random.normal(keys[6], (CAT, FC), dtype=jnp.float32) * 0.1
    b1 = jax.random.normal(keys[7], (FC,), dtype=jnp.float32) * 0.01
    w2 = jax.random.normal(keys[8], (FC, embed_dim), dtype=jnp.float32) * 0.1
    b2 = jnp.zeros((embed_dim,), dtype=jnp.float32)

    out = grid_encoder(obs, tables, w1, b1, w2, b2)
    out = jax.block_until_ready(out)

    ref = _ref_forward(obs, tables, w1, b1, w2, b2)
    assert out.shape == (B, N, embed_dim), out.shape
    # Matmul operands are bf16 (f32 accumulation), so allow small drift vs the
    # pure-f32 reference.
    assert jnp.allclose(out, ref, atol=3e-2, rtol=3e-2), (
        float(jnp.max(jnp.abs(out - ref))))

    print("KERNEL_OK")
</pallas_src>

<mosaic_0001>
module attributes {stable_mosaic.version = 11 : i64} {
  func.func @_grid_encoder_kernel(%arg0: i32, %arg1: memref<512x3xi32, #tpu.memory_space<vmem>>, %arg2: memref<32x256xbf16, #tpu.memory_space<vmem>>, %arg3: memref<1x256xf32, #tpu.memory_space<vmem>>, %arg4: memref<256x64xbf16, #tpu.memory_space<vmem>>, %arg5: memref<1x64xf32, #tpu.memory_space<vmem>>, %arg6: memref<512x64xf32, #tpu.memory_space<vmem>>) attributes {dimension_semantics = [#tpu.dimension_semantics<parallel>], iteration_bounds = array<i64: 1>, scalar_prefetch = 0 : i64, scratch_operands = 0 : i64, tpu.core_type = #tpu.core_type<tc>, window_params = [{transform_indices = @transform_0, window_bounds = array<i64: 512, 3>}, {pipeline_mode = #tpu.pipeline_mode<synchronous>, transform_indices = @transform_1, window_bounds = array<i64: 32, 256>}, {pipeline_mode = #tpu.pipeline_mode<synchronous>, transform_indices = @transform_2, window_bounds = array<i64: 1, 256>}, {pipeline_mode = #tpu.pipeline_mode<synchronous>, transform_indices = @transform_3, window_bounds = array<i64: 256, 64>}, {pipeline_mode = #tpu.pipeline_mode<synchronous>, transform_indices = @transform_4, window_bounds = array<i64: 1, 64>}, {transform_indices = @transform_5, window_bounds = array<i64: 512, 64>}]} {
    %c0 = arith.constant 0 : index
    %c0_0 = arith.constant 0 : index
    %0 = vector.load %arg1[%c0, %c0_0] : memref<512x3xi32, #tpu.memory_space<vmem>>, vector<512x3xi32>
    %1 = vector.extract_strided_slice %0 {offsets = [0, 0], sizes = [512, 1], strides = [1, 1]} : vector<512x3xi32> to vector<512x1xi32>
    %2 = vector.extract_strided_slice %0 {offsets = [0, 1], sizes = [512, 1], strides = [1, 1]} : vector<512x3xi32> to vector<512x1xi32>
    %c9_i32 = arith.constant 9 : i32
    %3 = vector.broadcast %c9_i32 : i32 to vector<512x1xi32>
    %4 = arith.addi %2, %3 : vector<512x1xi32>
    %5 = vector.extract_strided_slice %0 {offsets = [0, 2], sizes = [512, 1], strides = [1, 1]} : vector<512x3xi32> to vector<512x1xi32>
    %c9_i32_1 = arith.constant 9 : i32
    %6 = vector.broadcast %c9_i32_1 : i32 to vector<512x1xi32>
    %7 = arith.addi %5, %6 : vector<512x1xi32>
    %c6_i32 = arith.constant 6 : i32
    %8 = vector.broadcast %c6_i32 : i32 to vector<512x1xi32>
    %9 = arith.addi %7, %8 : vector<512x1xi32>
    %10 = tpu.iota {dimensions = array<i32: 1>} : vector<512x32xi32>
    %11 = vector.broadcast %1 : vector<512x1xi32> to vector<512x32xi32>
    %12 = arith.cmpi eq, %10, %11 : vector<512x32xi32>
    %13 = vector.broadcast %4 : vector<512x1xi32> to vector<512x32xi32>
    %14 = arith.cmpi eq, %10, %13 : vector<512x32xi32>
    %15 = arith.ori %12, %14 : vector<512x32xi1>
    %16 = vector.broadcast %9 : vector<512x1xi32> to vector<512x32xi32>
    %17 = arith.cmpi eq, %10, %16 : vector<512x32xi32>
    %18 = arith.ori %15, %17 : vector<512x32xi1>
    %19 = arith.extui %18 : vector<512x32xi1> to vector<512x32xi32>
    %20 = arith.sitofp %19 : vector<512x32xi32> to vector<512x32xf32>
    %21 = arith.truncf %20 : vector<512x32xf32> to vector<512x32xbf16>
    %c0_2 = arith.constant 0 : index
    %c0_3 = arith.constant 0 : index
    %22 = vector.load %arg2[%c0_2, %c0_3] : memref<32x256xbf16, #tpu.memory_space<vmem>>, vector<32x256xbf16>
    %cst = arith.constant dense<0.000000e+00> : vector<512x256xf32>
    %23 = tpu.matmul %21, %22, %cst {dimension_numbers = #tpu.dot_dimension_numbers<[1], [0], [0], [1], [0, 0, 1, 1], [], []>} : vector<512x32xbf16>, vector<32x256xbf16>, vector<512x256xf32> -> vector<512x256xf32>
    %c0_4 = arith.constant 0 : index
    %c0_5 = arith.constant 0 : index
    %24 = vector.load %arg3[%c0_4, %c0_5] : memref<1x256xf32, #tpu.memory_space<vmem>>, vector<1x256xf32>
    %25 = vector.broadcast %24 : vector<1x256xf32> to vector<512x256xf32>
    %26 = arith.addf %23, %25 : vector<512x256xf32>
    %cst_6 = arith.constant 0.000000e+00 : f32
    %27 = vector.broadcast %cst_6 : f32 to vector<512x256xf32>
    %28 = arith.maximumf %26, %27 : vector<512x256xf32>
    %29 = arith.truncf %28 : vector<512x256xf32> to vector<512x256xbf16>
    %c0_7 = arith.constant 0 : index
    %c0_8 = arith.constant 0 : index
    %30 = vector.load %arg4[%c0_7, %c0_8] : memref<256x64xbf16, #tpu.memory_space<vmem>>, vector<256x64xbf16>
    %cst_9 = arith.constant dense<0.000000e+00> : vector<512x64xf32>
    %31 = tpu.matmul %29, %30, %cst_9 {dimension_numbers = #tpu.dot_dimension_numbers<[1], [0], [0], [1], [0, 0, 1, 1], [], []>} : vector<512x256xbf16>, vector<256x64xbf16>, vector<512x64xf32> -> vector<512x64xf32>
    %c0_10 = arith.constant 0 : index
    %c0_11 = arith.constant 0 : index
    %32 = vector.load %arg5[%c0_10, %c0_11] : memref<1x64xf32, #tpu.memory_space<vmem>>, vector<1x64xf32>
    %33 = vector.broadcast %32 : vector<1x64xf32> to vector<512x64xf32>
    %34 = arith.addf %31, %33 : vector<512x64xf32>
    %c0_12 = arith.constant 0 : index
    %c0_13 = arith.constant 0 : index
    %35 = vector.load %arg6[%c0_12, %c0_13] : memref<512x64xf32, #tpu.memory_space<vmem>>, vector<512x64xf32>
    tpu.vector_store %arg6[%c0_12, %c0_13], %34 {strides = array<i32>} : memref<512x64xf32, #tpu.memory_space<vmem>>, vector<512x64xf32>,
    return
  }
  func.func @transform_0(%arg0: i32) -> (i32, i32) {
    %c0_i32 = arith.constant 0 : i32
    %c0_i32_0 = arith.constant 0 : i32
    return %arg0, %c0_i32 : i32, i32
  }
  func.func @transform_1(%arg0: i32) -> (i32, i32) {
    %c0_i32 = arith.constant 0 : i32
    %c0_i32_0 = arith.constant 0 : i32
    %c0_i32_1 = arith.constant 0 : i32
    return %c0_i32, %c0_i32_0 : i32, i32
  }
  func.func @transform_2(%arg0: i32) -> (i32, i32) {
    %c0_i32 = arith.constant 0 : i32
    %c0_i32_0 = arith.constant 0 : i32
    %c0_i32_1 = arith.constant 0 : i32
    return %c0_i32, %c0_i32_0 : i32, i32
  }
  func.func @transform_3(%arg0: i32) -> (i32, i32) {
    %c0_i32 = arith.constant 0 : i32
    %c0_i32_0 = arith.constant 0 : i32
    %c0_i32_1 = arith.constant 0 : i32
    return %c0_i32, %c0_i32_0 : i32, i32
  }
  func.func @transform_4(%arg0: i32) -> (i32, i32) {
    %c0_i32 = arith.constant 0 : i32
    %c0_i32_0 = arith.constant 0 : i32
    %c0_i32_1 = arith.constant 0 : i32
    return %c0_i32, %c0_i32_0 : i32, i32
  }
  func.func @transform_5(%arg0: i32) -> (i32, i32) {
    %c0_i32 = arith.constant 0 : i32
    %c0_i32_0 = arith.constant 0 : i32
    return %arg0, %c0_i32 : i32, i32
  }
}

</mosaic_0001>

<llo_original>
// kernel: grid_encoder.1
$region0: #{grid_encoder.1}
  #allocation0 [shape = 'u32[]', space=smem, size = 0x4, offset = 0x4, fixed_abs, tag = 'smem constant byte address 0x4 - core index']
  #allocation1 [shape = 'u32[144,128]{1,0:T(1,128)}', space=vmem, size = 0x12000, scoped, tag = 'internal scratch']
  %s0 = inlined_call_operand.vmem [shape: s32[512,3], index: 0, kind: input, shape index: {}]
  %s1 = inlined_call_operand.vmem [shape: bf16[32,256], index: 1, kind: input, shape index: {}]
  %s2 = inlined_call_operand.vmem [shape: f32[1,256], index: 2, kind: input, shape index: {}]
  %s3 = inlined_call_operand.vmem [shape: bf16[256,64], index: 3, kind: input, shape index: {}]
  %s4 = inlined_call_operand.vmem [shape: f32[1,64], index: 4, kind: input, shape index: {}]
  %s5 = inlined_call_operand.vmem [shape: f32[512,64], index: 5, kind: output, shape index: {}]
  %s6 = sld [smem:[#allocation0]]
  $region30: #{grid_encoder.1} parent=0
    _
  %s8 = ssub.s32 1, %s6
  %s9 = scalar_select 0, %s8, %s6
  // Predicated region
  $region2: #{grid_encoder.1} parent=0 // pred_check
    _
  $region3: #{grid_encoder.1} parent=0 // pred_check_branch
    %11 = sbr.rel (0) target = $region5
  $region4: #{grid_encoder.1} parent=0 // pred_region
    _
  $region5: #{grid_encoder.1} parent=0 // pred_fallthru
    _
  // Predicated region
  $region6: #{grid_encoder.1} parent=0 // pred_check
    _
  $region7: #{grid_encoder.1} parent=0 // pred_check_branch
    %13 = sbr.rel (0) target = $region9
  $region8: #{grid_encoder.1} parent=0 // pred_region
    _
  $region9: #{grid_encoder.1} parent=0 // pred_fallthru
    _
  // Predicated region
  $region10: #{grid_encoder.1} parent=0 // pred_check
    _
  $region11: #{grid_encoder.1} parent=0 // pred_check_branch
    %15 = sbr.rel (0) target = $region13
  $region12: #{grid_encoder.1} parent=0 // pred_region
    _
  $region13: #{grid_encoder.1} parent=0 // pred_fallthru
    _
  // Predicated region
  $region14: #{grid_encoder.1} parent=0 // pred_check
    _
  $region15: #{grid_encoder.1} parent=0 // pred_check_branch
    %17 = sbr.rel (0) target = $region17
  $region16: #{grid_encoder.1} parent=0 // pred_region
    _
  $region17: #{grid_encoder.1} parent=0 // pred_fallthru
    _
  // Predicated region
  $region18: #{grid_encoder.1} parent=0 // pred_check
    _
  $region19: #{grid_encoder.1} parent=0 // pred_check_branch
    %19 = sbr.rel (0) target = $region21
  $region20: #{grid_encoder.1} parent=0 // pred_region
    _
  $region21: #{grid_encoder.1} parent=0 // pred_fallthru
    _
  %v21 = vld [vmem:[%s0] sm:$0xff]
  %v22 = vld [vmem:[%s0 + $0x8] sm:$0xff]
  %v23 = vld [vmem:[%s0 + $0x10] sm:$0xff]
  %v24 = vld [vmem:[%s0 + $0x18] sm:$0xff]
  %v25 = vld [vmem:[%s0 + $0x20] sm:$0xff]
  %v26 = vld [vmem:[%s0 + $0x28] sm:$0xff]
  %v27 = vld [vmem:[%s0 + $0x30] sm:$0xff]
  %v28 = vld [vmem:[%s0 + $0x38] sm:$0xff]
  %v29 = vld [vmem:[%s0 + $0x40] sm:$0xff]
  %v30 = vld [vmem:[%s0 + $0x48] sm:$0xff]
  %v31 = vld [vmem:[%s0 + $0x50] sm:$0xff]
  %v32 = vld [vmem:[%s0 + $0x58] sm:$0xff]
  %v33 = vld [vmem:[%s0 + $0x60] sm:$0xff]
  %v34 = vld [vmem:[%s0 + $0x68] sm:$0xff]
  %v35 = vld [vmem:[%s0 + $0x70] sm:$0xff]
  %v36 = vld [vmem:[%s0 + $0x78] sm:$0xff]
  %v37 = vld [vmem:[%s0 + $0x80] sm:$0xff]
  %v38 = vld [vmem:[%s0 + $0x88] sm:$0xff]
  %v39 = vld [vmem:[%s0 + $0x90] sm:$0xff]
  %v40 = vld [vmem:[%s0 + $0x98] sm:$0xff]
  %v41 = vld [vmem:[%s0 + $0xa0] sm:$0xff]
  %v42 = vld [vmem:[%s0 + $0xa8] sm:$0xff]
  %v43 = vld [vmem:[%s0 + $0xb0] sm:$0xff]
  %v44 = vld [vmem:[%s0 + $0xb8] sm:$0xff]
  %v45 = vld [vmem:[%s0 + $0xc0] sm:$0xff]
  %v46 = vld [vmem:[%s0 + $0xc8] sm:$0xff]
  %v47 = vld [vmem:[%s0 + $0xd0] sm:$0xff]
  %v48 = vld [vmem:[%s0 + $0xd8] sm:$0xff]
  %v49 = vld [vmem:[%s0 + $0xe0] sm:$0xff]
  %v50 = vld [vmem:[%s0 + $0xe8] sm:$0xff]
  %v51 = vld [vmem:[%s0 + $0xf0] sm:$0xff]
  %v52 = vld [vmem:[%s0 + $0xf8] sm:$0xff]
  %v53 = vld [vmem:[%s0 + $0x100] sm:$0xff]
  %v54 = vld [vmem:[%s0 + $0x108] sm:$0xff]
  %v55 = vld [vmem:[%s0 + $0x110] sm:$0xff]
  %v56 = vld [vmem:[%s0 + $0x118] sm:$0xff]
  %v57 = vld [vmem:[%s0 + $0x120] sm:$0xff]
  %v58 = vld [vmem:[%s0 + $0x128] sm:$0xff]
  %v59 = vld [vmem:[%s0 + $0x130] sm:$0xff]
  %v60 = vld [vmem:[%s0 + $0x138] sm:$0xff]
  %v61 = vld [vmem:[%s0 + $0x140] sm:$0xff]
  %v62 = vld [vmem:[%s0 + $0x148] sm:$0xff]
  %v63 = vld [vmem:[%s0 + $0x150] sm:$0xff]
  %v64 = vld [vmem:[%s0 + $0x158] sm:$0xff]
  %v65 = vld [vmem:[%s0 + $0x160] sm:$0xff]
  %v66 = vld [vmem:[%s0 + $0x168] sm:$0xff]
  %v67 = vld [vmem:[%s0 + $0x170] sm:$0xff]
  %v68 = vld [vmem:[%s0 + $0x178] sm:$0xff]
  %v69 = vld [vmem:[%s0 + $0x180] sm:$0xff]
  %v70 = vld [vmem:[%s0 + $0x188] sm:$0xff]
  %v71 = vld [vmem:[%s0 + $0x190] sm:$0xff]
  %v72 = vld [vmem:[%s0 + $0x198] sm:$0xff]
  %v73 = vld [vmem:[%s0 + $0x1a0] sm:$0xff]
  %v74 = vld [vmem:[%s0 + $0x1a8] sm:$0xff]
  %v75 = vld [vmem:[%s0 + $0x1b0] sm:$0xff]
  %v76 = vld [vmem:[%s0 + $0x1b8] sm:$0xff]
  %v77 = vld [vmem:[%s0 + $0x1c0] sm:$0xff]
  %v78 = vld [vmem:[%s0 + $0x1c8] sm:$0xff]
  %v79 = vld [vmem:[%s0 + $0x1d0] sm:$0xff]
  %v80 = vld [vmem:[%s0 + $0x1d8] sm:$0xff]
  %v81 = vld [vmem:[%s0 + $0x1e0] sm:$0xff]
  %v82 = vld [vmem:[%s0 + $0x1e8] sm:$0xff]
  %v83 = vld [vmem:[%s0 + $0x1f0] sm:$0xff]
  %v84 = vld [vmem:[%s0 + $0x1f8] sm:$0xff]
  %v85 = vadd.s32 %v21, 9
  %v86 = vadd.s32 %v22, 9
  %v87 = vadd.s32 %v23, 9
  %v88 = vadd.s32 %v24, 9
  %v89 = vadd.s32 %v25, 9
  %v90 = vadd.s32 %v26, 9
  %v91 = vadd.s32 %v27, 9
  %v92 = vadd.s32 %v28, 9
  %v93 = vadd.s32 %v29, 9
  %v94 = vadd.s32 %v30, 9
  %v95 = vadd.s32 %v31, 9
  %v96 = vadd.s32 %v32, 9
  %v97 = vadd.s32 %v33, 9
  %v98 = vadd.s32 %v34, 9
  %v99 = vadd.s32 %v35, 9
  %v100 = vadd.s32 %v36, 9
  %v101 = vadd.s32 %v37, 9
  %v102 = vadd.s32 %v38, 9
  %v103 = vadd.s32 %v39, 9
  %v104 = vadd.s32 %v40, 9
  %v105 = vadd.s32 %v41, 9
  %v106 = vadd.s32 %v42, 9
  %v107 = vadd.s32 %v43, 9
  %v108 = vadd.s32 %v44, 9
  %v109 = vadd.s32 %v45, 9
  %v110 = vadd.s32 %v46, 9
  %v111 = vadd.s32 %v47, 9
  %v112 = vadd.s32 %v48, 9
  %v113 = vadd.s32 %v49, 9
  %v114 = vadd.s32 %v50, 9
  %v115 = vadd.s32 %v51, 9
  %v116 = vadd.s32 %v52, 9
  %v117 = vadd.s32 %v53, 9
  %v118 = vadd.s32 %v54, 9
  %v119 = vadd.s32 %v55, 9
  %v120 = vadd.s32 %v56, 9
  %v121 = vadd.s32 %v57, 9
  %v122 = vadd.s32 %v58, 9
  %v123 = vadd.s32 %v59, 9
  %v124 = vadd.s32 %v60, 9
  %v125 = vadd.s32 %v61, 9
  %v126 = vadd.s32 %v62, 9
  %v127 = vadd.s32 %v63, 9
  %v128 = vadd.s32 %v64, 9
  %v129 = vadd.s32 %v65, 9
  %v130 = vadd.s32 %v66, 9
  %v131 = vadd.s32 %v67, 9
  %v132 = vadd.s32 %v68, 9
  %v133 = vadd.s32 %v69, 9
  %v134 = vadd.s32 %v70, 9
  %v135 = vadd.s32 %v71, 9
  %v136 = vadd.s32 %v72, 9
  %v137 = vadd.s32 %v73, 9
  %v138 = vadd.s32 %v74, 9
  %v139 = vadd.s32 %v75, 9
  %v140 = vadd.s32 %v76, 9
  %v141 = vadd.s32 %v77, 9
  %v142 = vadd.s32 %v78, 9
  %v143 = vadd.s32 %v79, 9
  %v144 = vadd.s32 %v80, 9
  %v145 = vadd.s32 %v81, 9
  %v146 = vadd.s32 %v82, 9
  %v147 = vadd.s32 %v83, 9
  %v148 = vadd.s32 %v84, 9
  %v149 = vadd.s32 %v85, 6
  %v150 = vadd.s32 %v86, 6
  %v151 = vadd.s32 %v87, 6
  %v152 = vadd.s32 %v88, 6
  %v153 = vadd.s32 %v89, 6
  %v154 = vadd.s32 %v90, 6
  %v155 = vadd.s32 %v91, 6
  %v156 = vadd.s32 %v92, 6
  %v157 = vadd.s32 %v93, 6
  %v158 = vadd.s32 %v94, 6
  %v159 = vadd.s32 %v95, 6
  %v160 = vadd.s32 %v96, 6
  %v161 = vadd.s32 %v97, 6
  %v162 = vadd.s32 %v98, 6
  %v163 = vadd.s32 %v99, 6
  %v164 = vadd.s32 %v100, 6
  %v165 = vadd.s32 %v101, 6
  %v166 = vadd.s32 %v102, 6
  %v167 = vadd.s32 %v103, 6
  %v168 = vadd.s32 %v104, 6
  %v169 = vadd.s32 %v105, 6
  %v170 = vadd.s32 %v106, 6
  %v171 = vadd.s32 %v107, 6
  %v172 = vadd.s32 %v108, 6
  %v173 = vadd.s32 %v109, 6
  %v174 = vadd.s32 %v110, 6
  %v175 = vadd.s32 %v111, 6
  %v176 = vadd.s32 %v112, 6
  %v177 = vadd.s32 %v113, 6
  %v178 = vadd.s32 %v114, 6
  %v179 = vadd.s32 %v115, 6
  %v180 = vadd.s32 %v116, 6
  %v181 = vadd.s32 %v117, 6
  %v182 = vadd.s32 %v118, 6
  %v183 = vadd.s32 %v119, 6
  %v184 = vadd.s32 %v120, 6
  %v185 = vadd.s32 %v121, 6
  %v186 = vadd.s32 %v122, 6
  %v187 = vadd.s32 %v123, 6
  %v188 = vadd.s32 %v124, 6
  %v189 = vadd.s32 %v125, 6
  %v190 = vadd.s32 %v126, 6
  %v191 = vadd.s32 %v127, 6
  %v192 = vadd.s32 %v128, 6
  %v193 = vadd.s32 %v129, 6
  %v194 = vadd.s32 %v130, 6
  %v195 = vadd.s32 %v131, 6
  %v196 = vadd.s32 %v132, 6
  %v197 = vadd.s32 %v133, 6
  %v198 = vadd.s32 %v134, 6
  %v199 = vadd.s32 %v135, 6
  %v200 = vadd.s32 %v136, 6
  %v201 = vadd.s32 %v137, 6
  %v202 = vadd.s32 %v138, 6
  %v203 = vadd.s32 %v139, 6
  %v204 = vadd.s32 %v140, 6
  %v205 = vadd.s32 %v141, 6
  %v206 = vadd.s32 %v142, 6
  %v207 = vadd.s32 %v143, 6
  %v208 = vadd.s32 %v144, 6
  %v209 = vadd.s32 %v145, 6
  %v210 = vadd.s32 %v146, 6
  %v211 = vadd.s32 %v147, 6
  %v212 = vadd.s32 %v148, 6
  %v213 = vlaneseq
  %v214 = vand.u32 %v213, 127
  %215 = vset.pattern.permute.xlu0 0
  %216 = vperm.xlu0 %215, %v21
  %v217 = vpop.permute.xlu0 %216
  %218 = vset.pattern.permute.xlu0 0
  %219 = vperm.xlu0 %218, %v22
  %v220 = vpop.permute.xlu0 %219
  %221 = vset.pattern.permute.xlu0 0
  %222 = vperm.xlu0 %221, %v23
  %v223 = vpop.permute.xlu0 %222
  %224 = vset.pattern.permute.xlu0 0
  %225 = vperm.xlu0 %224, %v24
  %v226 = vpop.permute.xlu0 %225
  %227 = vset.pattern.permute.xlu0 0
  %228 = vperm.xlu0 %227, %v25
  %v229 = vpop.permute.xlu0 %228
  %230 = vset.pattern.permute.xlu0 0
  %231 = vperm.xlu0 %230, %v26
  %v232 = vpop.permute.xlu0 %231
  %233 = vset.pattern.permute.xlu0 0
  %234 = vperm.xlu0 %233, %v27
  %v235 = vpop.permute.xlu0 %234
  %236 = vset.pattern.permute.xlu0 0
  %237 = vperm.xlu0 %236, %v28
  %v238 = vpop.permute.xlu0 %237
  %239 = vset.pattern.permute.xlu0 0
  %240 = vperm.xlu0 %239, %v29
  %v241 = vpop.permute.xlu0 %240
  %242 = vset.pattern.permute.xlu0 0
  %243 = vperm.xlu0 %242, %v30
  %v244 = vpop.permute.xlu0 %243
  %245 = vset.pattern.permute.xlu0 0
  %246 = vperm.xlu0 %245, %v31
  %v247 = vpop.permute.xlu0 %246
  %248 = vset.pattern.permute.xlu0 0
  %249 = vperm.xlu0 %248, %v32
  %v250 = vpop.permute.xlu0 %249
  %251 = vset.pattern.permute.xlu0 0
  %252 = vperm.xlu0 %251, %v33
  %v253 = vpop.permute.xlu0 %252
  %254 = vset.pattern.permute.xlu0 0
  %255 = vperm.xlu0 %254, %v34
  %v256 = vpop.permute.xlu0 %255
  %257 = vset.pattern.permute.xlu0 0
  %258 = vperm.xlu0 %257, %v35
  %v259 = vpop.permute.xlu0 %258
  %260 = vset.pattern.permute.xlu0 0
  %261 = vperm.xlu0 %260, %v36
  %v262 = vpop.permute.xlu0 %261
  %263 = vset.pattern.permute.xlu0 0
  %264 = vperm.xlu0 %263, %v37
  %v265 = vpop.permute.xlu0 %264
  %266 = vset.pattern.permute.xlu0 0
  %267 = vperm.xlu0 %266, %v38
  %v268 = vpop.permute.xlu0 %267
  %269 = vset.pattern.permute.xlu0 0
  %270 = vperm.xlu0 %269, %v39
  %v271 = vpop.permute.xlu0 %270
  %272 = vset.pattern.permute.xlu0 0
  %273 = vperm.xlu0 %272, %v40
  %v274 = vpop.permute.xlu0 %273
  %275 = vset.pattern.permute.xlu0 0
  %276 = vperm.xlu0 %275, %v41
  %v277 = vpop.permute.xlu0 %276
  %278 = vset.pattern.permute.xlu0 0
  %279 = vperm.xlu0 %278, %v42
  %v280 = vpop.permute.xlu0 %279
  %281 = vset.pattern.permute.xlu0 0
  %282 = vperm.xlu0 %281, %v43
  %v283 = vpop.permute.xlu0 %282
  %284 = vset.pattern.permute.xlu0 0
  %285 = vperm.xlu0 %284, %v44
  %v286 = vpop.permute.xlu0 %285
  %287 = vset.pattern.permute.xlu0 0
  %288 = vperm.xlu0 %287, %v45
  %v289 = vpop.permute.xlu0 %288
  %290 = vset.pattern.permute.xlu0 0
  %291 = vperm.xlu0 %290, %v46
  %v292 = vpop.permute.xlu0 %291
  %293 = vset.pattern.permute.xlu0 0
  %294 = vperm.xlu0 %293, %v47
  %v295 = vpop.permute.xlu0 %294
  %296 = vset.pattern.permute.xlu0 0
  %297 = vperm.xlu0 %296, %v48
  %v298 = vpop.permute.xlu0 %297
  %299 = vset.pattern.permute.xlu0 0
  %300 = vperm.xlu0 %299, %v49
  %v301 = vpop.permute.xlu0 %300
  %302 = vset.pattern.permute.xlu0 0
  %303 = vperm.xlu0 %302, %v50
  %v304 = vpop.permute.xlu0 %303
  %305 = vset.pattern.permute.xlu0 0
  %306 = vperm.xlu0 %305, %v51
  %v307 = vpop.permute.xlu0 %306
  %308 = vset.pattern.permute.xlu0 0
  %309 = vperm.xlu0 %308, %v52
  %v310 = vpop.permute.xlu0 %309
  %311 = vset.pattern.permute.xlu0 0
  %312 = vperm.xlu0 %311, %v53
  %v313 = vpop.permute.xlu0 %312
  %314 = vset.pattern.permute.xlu0 0
  %315 = vperm.xlu0 %314, %v54
  %v316 = vpop.permute.xlu0 %315
  %317 = vset.pattern.permute.xlu0 0
  %318 = vperm.xlu0 %317, %v55
  %v319 = vpop.permute.xlu0 %318
  %320 = vset.pattern.permute.xlu0 0
  %321 = vperm.xlu0 %320, %v56
  %v322 = vpop.permute.xlu0 %321
  %323 = vset.pattern.permute.xlu0 0
  %324 = vperm.xlu0 %323, %v57
  %v325 = vpop.permute.xlu0 %324
  %326 = vset.pattern.permute.xlu0 0
  %327 = vperm.xlu0 %326, %v58
  %v328 = vpop.permute.xlu0 %327
  %329 = vset.pattern.permute.xlu0 0
  %330 = vperm.xlu0 %329, %v59
  %v331 = vpop.permute.xlu0 %330
  %332 = vset.pattern.permute.xlu0 0
  %333 = vperm.xlu0 %332, %v60
  %v334 = vpop.permute.xlu0 %333
  %335 = vset.pattern.permute.xlu0 0
  %336 = vperm.xlu0 %335, %v61
  %v337 = vpop.permute.xlu0 %336
  %338 = vset.pattern.permute.xlu0 0
  %339 = vperm.xlu0 %338, %v62
  %v340 = vpop.permute.xlu0 %339
  %341 = vset.pattern.permute.xlu0 0
  %342 = vperm.xlu0 %341, %v63
  %v343 = vpop.permute.xlu0 %342
  %344 = vset.pattern.permute.xlu0 0
  %345 = vperm.xlu0 %344, %v64
  %v346 = vpop.permute.xlu0 %345
  %347 = vset.pattern.permute.xlu0 0
  %348 = vperm.xlu0 %347, %v65
  %v349 = vpop.permute.xlu0 %348
  %350 = vset.pattern.permute.xlu0 0
  %351 = vperm.xlu0 %350, %v66
  %v352 = vpop.permute.xlu0 %351
  %353 = vset.pattern.permute.xlu0 0
  %354 = vperm.xlu0 %353, %v67
  %v355 = vpop.permute.xlu0 %354
  %356 = vset.pattern.permute.xlu0 0
  %357 = vperm.xlu0 %356, %v68
  %v358 = vpop.permute.xlu0 %357
  %359 = vset.pattern.permute.xlu0 0
  %360 = vperm.xlu0 %359, %v69
  %v361 = vpop.permute.xlu0 %360
  %362 = vset.pattern.permute.xlu0 0
  %363 = vperm.xlu0 %362, %v70
  %v364 = vpop.permute.xlu0 %363
  %365 = vset.pattern.permute.xlu0 0
  %366 = vperm.xlu0 %365, %v71
  %v367 = vpop.permute.xlu0 %366
  %368 = vset.pattern.permute.xlu0 0
  %369 = vperm.xlu0 %368, %v72
  %v370 = vpop.permute.xlu0 %369
  %371 = vset.pattern.permute.xlu0 0
  %372 = vperm.xlu0 %371, %v73
  %v373 = vpop.permute.xlu0 %372
  %374 = vset.pattern.permute.xlu0 0
  %375 = vperm.xlu0 %374, %v74
  %v376 = vpop.permute.xlu0 %375
  %377 = vset.pattern.permute.xlu0 0
  %378 = vperm.xlu0 %377, %v75
  %v379 = vpop.permute.xlu0 %378
  %380 = vset.pattern.permute.xlu0 0
  %381 = vperm.xlu0 %380, %v76
  %v382 = vpop.permute.xlu0 %381
  %383 = vset.pattern.permute.xlu0 0
  %384 = vperm.xlu0 %383, %v77
  %v385 = vpop.permute.xlu0 %384
  %386 = vset.pattern.permute.xlu0 0
  %387 = vperm.xlu0 %386, %v78
  %v388 = vpop.permute.xlu0 %387
  %389 = vset.pattern.permute.xlu0 0
  %390 = vperm.xlu0 %389, %v79
  %v391 = vpop.permute.xlu0 %390
  %392 = vset.pattern.permute.xlu0 0
  %393 = vperm.xlu0 %392, %v80
  %v394 = vpop.permute.xlu0 %393
  %395 = vset.pattern.permute.xlu0 0
  %396 = vperm.xlu0 %395, %v81
  %v397 = vpop.permute.xlu0 %396
  %398 = vset.pattern.permute.xlu0 0
  %399 = vperm.xlu0 %398, %v82
  %v400 = vpop.permute.xlu0 %399
  %401 = vset.pattern.permute.xlu0 0
  %402 = vperm.xlu0 %401, %v83
  %v403 = vpop.permute.xlu0 %402
  %404 = vset.pattern.permute.xlu0 0
  %405 = vperm.xlu0 %404, %v84
  %v406 = vpop.permute.xlu0 %405
  %vm407 = vcmp.eq.s32.totalorder %v214, %v217
  %vm408 = vcmp.eq.s32.totalorder %v214, %v220
  %vm409 = vcmp.eq.s32.totalorder %v214, %v223
  %vm410 = vcmp.eq.s32.totalorder %v214, %v226
  %vm411 = vcmp.eq.s32.totalorder %v214, %v229
  %vm412 = vcmp.eq.s32.totalorder %v214, %v232
  %vm413 = vcmp.eq.s32.totalorder %v214, %v235
  %vm414 = vcmp.eq.s32.totalorder %v214, %v238
  %vm415 = vcmp.eq.s32.totalorder %v214, %v241
  %vm416 = vcmp.eq.s32.totalorder %v214, %v244
  %vm417 = vcmp.eq.s32.totalorder %v214, %v247
  %vm418 = vcmp.eq.s32.totalorder %v214, %v250
  %vm419 = vcmp.eq.s32.totalorder %v214, %v253
  %vm420 = vcmp.eq.s32.totalorder %v214, %v256
  %vm421 = vcmp.eq.s32.totalorder %v214, %v259
  %vm422 = vcmp.eq.s32.totalorder %v214, %v262
  %vm423 = vcmp.eq.s32.totalorder %v214, %v265
  %vm424 = vcmp.eq.s32.totalorder %v214, %v268
  %vm425 = vcmp.eq.s32.totalorder %v214, %v271
  %vm426 = vcmp.eq.s32.totalorder %v214, %v274
  %vm427 = vcmp.eq.s32.totalorder %v214, %v277
  %vm428 = vcmp.eq.s32.totalorder %v214, %v280
  %vm429 = vcmp.eq.s32.totalorder %v214, %v283
  %vm430 = vcmp.eq.s32.totalorder %v214, %v286
  %vm431 = vcmp.eq.s32.totalorder %v214, %v289
  %vm432 = vcmp.eq.s32.totalorder %v214, %v292
  %vm433 = vcmp.eq.s32.totalorder %v214, %v295
  %vm434 = vcmp.eq.s32.totalorder %v214, %v298
  %vm435 = vcmp.eq.s32.totalorder %v214, %v301
  %vm436 = vcmp.eq.s32.totalorder %v214, %v304
  %vm437 = vcmp.eq.s32.totalorder %v214, %v307
  %vm438 = vcmp.eq.s32.totalorder %v214, %v310
  %vm439 = vcmp.eq.s32.totalorder %v214, %v313
  %vm440 = vcmp.eq.s32.totalorder %v214, %v316
  %vm441 = vcmp.eq.s32.totalorder %v214, %v319
  %vm442 = vcmp.eq.s32.totalorder %v214, %v322
  %vm443 = vcmp.eq.s32.totalorder %v214, %v325
  %vm444 = vcmp.eq.s32.totalorder %v214, %v328
  %vm445 = vcmp.eq.s32.totalorder %v214, %v331
  %vm446 = vcmp.eq.s32.totalorder %v214, %v334
  %vm447 = vcmp.eq.s32.totalorder %v214, %v337
  %vm448 = vcmp.eq.s32.totalorder %v214, %v340
  %vm449 = vcmp.eq.s32.totalorder %v214, %v343
  %vm450 = vcmp.eq.s32.totalorder %v214, %v346
  %vm451 = vcmp.eq.s32.totalorder %v214, %v349
  %vm452 = vcmp.eq.s32.totalorder %v214, %v352
  %vm453 = vcmp.eq.s32.totalorder %v214, %v355
  %vm454 = vcmp.eq.s32.totalorder %v214, %v358
  %vm455 = vcmp.eq.s32.totalorder %v214, %v361
  %vm456 = vcmp.eq.s32.totalorder %v214, %v364
  %vm457 = vcmp.eq.s32.totalorder %v214, %v367
  %vm458 = vcmp.eq.s32.totalorder %v214, %v370
  %vm459 = vcmp.eq.s32.totalorder %v214, %v373
  %vm460 = vcmp.eq.s32.totalorder %v214, %v376
  %vm461 = vcmp.eq.s32.totalorder %v214, %v379
  %vm462 = vcmp.eq.s32.totalorder %v214, %v382
  %vm463 = vcmp.eq.s32.totalorder %v214, %v385
  %vm464 = vcmp.eq.s32.totalorder %v214, %v388
  %vm465 = vcmp.eq.s32.totalorder %v214, %v391
  %vm466 = vcmp.eq.s32.totalorder %v214, %v394
  %vm467 = vcmp.eq.s32.totalorder %v214, %v397
  %vm468 = vcmp.eq.s32.totalorder %v214, %v400
  %vm469 = vcmp.eq.s32.totalorder %v214, %v403
  %vm470 = vcmp.eq.s32.totalorder %v214, %v406
  %471 = vset.pattern.permute.xlu0 1
  %472 = vperm.xlu0 %471, %v85
  %v473 = vpop.permute.xlu0 %472
  %474 = vset.pattern.permute.xlu0 1
  %475 = vperm.xlu0 %474, %v86
  %v476 = vpop.permute.xlu0 %475
  %477 = vset.pattern.permute.xlu0 1
  %478 = vperm.xlu0 %477, %v87
  %v479 = vpop.permute.xlu0 %478
  %480 = vset.pattern.permute.xlu0 1
  %481 = vperm.xlu0 %480, %v88
  %v482 = vpop.permute.xlu0 %481
  %483 = vset.pattern.permute.xlu0 1
  %484 = vperm.xlu0 %483, %v89
  %v485 = vpop.permute.xlu0 %484
  %486 = vset.pattern.permute.xlu0 1
  %487 = vperm.xlu0 %486, %v90
  %v488 = vpop.permute.xlu0 %487
  %489 = vset.pattern.permute.xlu0 1
  %490 = vperm.xlu0 %489, %v91
  %v491 = vpop.permute.xlu0 %490
  %492 = vset.pattern.permute.xlu0 1
  %493 = vperm.xlu0 %492, %v92
  %v494 = vpop.permute.xlu0 %493
  %495 = vset.pattern.permute.xlu0 1
  %496 = vperm.xlu0 %495, %v93
  %v497 = vpop.permute.xlu0 %496
  %498 = vset.pattern.permute.xlu0 1
  %499 = vperm.xlu0 %498, %v94
  %v500 = vpop.permute.xlu0 %499
  %501 = vset.pattern.permute.xlu0 1
  %502 = vperm.xlu0 %501, %v95
  %v503 = vpop.permute.xlu0 %502
  %504 = vset.pattern.permute.xlu0 1
  %505 = vperm.xlu0 %504, %v96
  %v506 = vpop.permute.xlu0 %505
  %507 = vset.pattern.permute.xlu0 1
  %508 = vperm.xlu0 %507, %v97
  %v509 = vpop.permute.xlu0 %508
  %510 = vset.pattern.permute.xlu0 1
  %511 = vperm.xlu0 %510, %v98
  %v512 = vpop.permute.xlu0 %511
  %513 = vset.pattern.permute.xlu0 1
  %514 = vperm.xlu0 %513, %v99
  %v515 = vpop.permute.xlu0 %514
  %516 = vset.pattern.permute.xlu0 1
  %517 = vperm.xlu0 %516, %v100
  %v518 = vpop.permute.xlu0 %517
  %519 = vset.pattern.permute.xlu0 1
  %520 = vperm.xlu0 %519, %v101
  %v521 = vpop.permute.xlu0 %520
  %522 = vset.pattern.permute.xlu0 1
  %523 = vperm.xlu0 %522, %v102
  %v524 = vpop.permute.xlu0 %523
  %525 = vset.pattern.permute.xlu0 1
  %526 = vperm.xlu0 %525, %v103
  %v527 = vpop.permute.xlu0 %526
  %528 = vset.pattern.permute.xlu0 1
  %529 = vperm.xlu0 %528, %v104
  %v530 = vpop.permute.xlu0 %529
  %531 = vset.pattern.permute.xlu0 1
  %532 = vperm.xlu0 %531, %v105
  %v533 = vpop.permute.xlu0 %532
  %534 = vset.pattern.permute.xlu0 1
  %535 = vperm.xlu0 %534, %v106
  %v536 = vpop.permute.xlu0 %535
  %537 = vset.pattern.permute.xlu0 1
  %538 = vperm.xlu0 %537, %v107
  %v539 = vpop.permute.xlu0 %538
  %540 = vset.pattern.permute.xlu0 1
  %541 = vperm.xlu0 %540, %v108
  %v542 = vpop.permute.xlu0 %541
  %543 = vset.pattern.permute.xlu0 1
  %544 = vperm.xlu0 %543, %v109
  %v545 = vpop.permute.xlu0 %544
  %546 = vset.pattern.permute.xlu0 1
  %547 = vperm.xlu0 %546, %v110
  %v548 = vpop.permute.xlu0 %547
  %549 = vset.pattern.permute.xlu0 1
  %550 = vperm.xlu0 %549, %v111
  %v551 = vpop.permute.xlu0 %550
  %552 = vset.pattern.permute.xlu0 1
  %553 = vperm.xlu0 %552, %v112
  %v554 = vpop.permute.xlu0 %553
  %555 = vset.pattern.permute.xlu0 1
  %556 = vperm.xlu0 %555, %v113
  %v557 = vpop.permute.xlu0 %556
  %558 = vset.pattern.permute.xlu0 1
  %559 = vperm.xlu0 %558, %v114
  %v560 = vpop.permute.xlu0 %559
  %561 = vset.pattern.permute.xlu0 1
  %562 = vperm.xlu0 %561, %v115
  %v563 = vpop.permute.xlu0 %562
  %564 = vset.pattern.permute.xlu0 1
  %565 = vperm.xlu0 %564, %v116
  %v566 = vpop.permute.xlu0 %565
  %567 = vset.pattern.permute.xlu0 1
  %568 = vperm.xlu0 %567, %v117
  %v569 = vpop.permute.xlu0 %568
  %570 = vset.pattern.permute.xlu0 1
  %571 = vperm.xlu0 %570, %v118
  %v572 = vpop.permute.xlu0 %571
  %573 = vset.pattern.permute.xlu0 1
  %574 = vperm.xlu0 %573, %v119
  %v575 = vpop.permute.xlu0 %574
  %576 = vset.pattern.permute.xlu0 1
  %577 = vperm.xlu0 %576, %v120
  %v578 = vpop.permute.xlu0 %577
  %579 = vset.pattern.permute.xlu0 1
  %580 = vperm.xlu0 %579, %v121
  %v581 = vpop.permute.xlu0 %580
  %582 = vset.pattern.permute.xlu0 1
  %583 = vperm.xlu0 %582, %v122
  %v584 = vpop.permute.xlu0 %583
  %585 = vset.pattern.permute.xlu0 1
  %586 = vperm.xlu0 %585, %v123
  %v587 = vpop.permute.xlu0 %586
  %588 = vset.pattern.permute.xlu0 1
  %589 = vperm.xlu0 %588, %v124
  %v590 = vpop.permute.xlu0 %589
  %591 = vset.pattern.permute.xlu0 1
  %592 = vperm.xlu0 %591, %v125
  %v593 = vpop.permute.xlu0 %592
  %594 = vset.pattern.permute.xlu0 1
  %595 = vperm.xlu0 %594, %v126
  %v596 = vpop.permute.xlu0 %595
  %597 = vset.pattern.permute.xlu0 1
  %598 = vperm.xlu0 %597, %v127
  %v599 = vpop.permute.xlu0 %598
  %600 = vset.pattern.permute.xlu0 1
  %601 = vperm.xlu0 %600, %v128
  %v602 = vpop.permute.xlu0 %601
  %603 = vset.pattern.permute.xlu0 1
  %604 = vperm.xlu0 %603, %v129
  %v605 = vpop.permute.xlu0 %604
  %606 = vset.pattern.permute.xlu0 1
  %607 = vperm.xlu0 %606, %v130
  %v608 = vpop.permute.xlu0 %607
  %609 = vset.pattern.permute.xlu0 1
  %610 = vperm.xlu0 %609, %v131
  %v611 = vpop.permute.xlu0 %610
  %612 = vset.pattern.permute.xlu0 1
  %613 = vperm.xlu0 %612, %v132
  %v614 = vpop.permute.xlu0 %613
  %615 = vset.pattern.permute.xlu0 1
  %616 = vperm.xlu0 %615, %v133
  %v617 = vpop.permute.xlu0 %616
  %618 = vset.pattern.permute.xlu0 1
  %619 = vperm.xlu0 %618, %v134
  %v620 = vpop.permute.xlu0 %619
  %621 = vset.pattern.permute.xlu0 1
  %622 = vperm.xlu0 %621, %v135
  %v623 = vpop.permute.xlu0 %622
  %624 = vset.pattern.permute.xlu0 1
  %625 = vperm.xlu0 %624, %v136
  %v626 = vpop.permute.xlu0 %625
  %627 = vset.pattern.permute.xlu0 1
  %628 = vperm.xlu0 %627, %v137
  %v629 = vpop.permute.xlu0 %628
  %630 = vset.pattern.permute.xlu0 1
  %631 = vperm.xlu0 %630, %v138
  %v632 = vpop.permute.xlu0 %631
  %633 = vset.pattern.permute.xlu0 1
  %634 = vperm.xlu0 %633, %v139
  %v635 = vpop.permute.xlu0 %634
  %636 = vset.pattern.permute.xlu0 1
  %637 = vperm.xlu0 %636, %v140
  %v638 = vpop.permute.xlu0 %637
  %639 = vset.pattern.permute.xlu0 1
  %640 = vperm.xlu0 %639, %v141
  %v641 = vpop.permute.xlu0 %640
  %642 = vset.pattern.permute.xlu0 1
  %643 = vperm.xlu0 %642, %v142
  %v644 = vpop.permute.xlu0 %643
  %645 = vset.pattern.permute.xlu0 1
  %646 = vperm.xlu0 %645, %v143
  %v647 = vpop.permute.xlu0 %646
  %648 = vset.pattern.permute.xlu0 1
  %649 = vperm.xlu0 %648, %v144
  %v650 = vpop.permute.xlu0 %649
  %651 = vset.pattern.permute.xlu0 1
  %652 = vperm.xlu0 %651, %v145
  %v653 = vpop.permute.xlu0 %652
  %654 = vset.pattern.permute.xlu0 1
  %655 = vperm.xlu0 %654, %v146
  %v656 = vpop.permute.xlu0 %655
  %657 = vset.pattern.permute.xlu0 1
  %658 = vperm.xlu0 %657, %v147
  %v659 = vpop.permute.xlu0 %658
  %660 = vset.pattern.permute.xlu0 1
  %661 = vperm.xlu0 %660, %v148
  %v662 = vpop.permute.xlu0 %661
  %vm663 = vcmp.eq.s32.totalorder %v214, %v473
  %vm664 = vcmp.eq.s32.totalorder %v214, %v476
  %vm665 = vcmp.eq.s32.totalorder %v214, %v479
  %vm666 = vcmp.eq.s32.totalorder %v214, %v482
  %vm667 = vcmp.eq.s32.totalorder %v214, %v485
  %vm668 = vcmp.eq.s32.totalorder %v214, %v488
  %vm669 = vcmp.eq.s32.totalorder %v214, %v491
  %vm670 = vcmp.eq.s32.totalorder %v214, %v494
  %vm671 = vcmp.eq.s32.totalorder %v214, %v497
  %vm672 = vcmp.eq.s32.totalorder %v214, %v500
  %vm673 = vcmp.eq.s32.totalorder %v214, %v503
  %vm674 = vcmp.eq.s32.totalorder %v214, %v506
  %vm675 = vcmp.eq.s32.totalorder %v214, %v509
  %vm676 = vcmp.eq.s32.totalorder %v214, %v512
  %vm677 = vcmp.eq.s32.totalorder %v214, %v515
  %vm678 = vcmp.eq.s32.totalorder %v214, %v518
  %vm679 = vcmp.eq.s32.totalorder %v214, %v521
  %vm680 = vcmp.eq.s32.totalorder %v214, %v524
  %vm681 = vcmp.eq.s32.totalorder %v214, %v527
  %vm682 = vcmp.eq.s32.totalorder %v214, %v530
  %vm683 = vcmp.eq.s32.totalorder %v214, %v533
  %vm684 = vcmp.eq.s32.totalorder %v214, %v536
  %vm685 = vcmp.eq.s32.totalorder %v214, %v539
  %vm686 = vcmp.eq.s32.totalorder %v214, %v542
  %vm687 = vcmp.eq.s32.totalorder %v214, %v545
  %vm688 = vcmp.eq.s32.totalorder %v214, %v548
  %vm689 = vcmp.eq.s32.totalorder %v214, %v551
  %vm690 = vcmp.eq.s32.totalorder %v214, %v554
  %vm691 = vcmp.eq.s32.totalorder %v214, %v557
  %vm692 = vcmp.eq.s32.totalorder %v214, %v560
  %vm693 = vcmp.eq.s32.totalorder %v214, %v563
  %vm694 = vcmp.eq.s32.totalorder %v214, %v566
  %vm695 = vcmp.eq.s32.totalorder %v214, %v569
  %vm696 = vcmp.eq.s32.totalorder %v214, %v572
  %vm697 = vcmp.eq.s32.totalorder %v214, %v575
  %vm698 = vcmp.eq.s32.totalorder %v214, %v578
  %vm699 = vcmp.eq.s32.totalorder %v214, %v581
  %vm700 = vcmp.eq.s32.totalorder %v214, %v584
  %vm701 = vcmp.eq.s32.totalorder %v214, %v587
  %vm702 = vcmp.eq.s32.totalorder %v214, %v590
  %vm703 = vcmp.eq.s32.totalorder %v214, %v593
  %vm704 = vcmp.eq.s32.totalorder %v214, %v596
  %vm705 = vcmp.eq.s32.totalorder %v214, %v599
  %vm706 = vcmp.eq.s32.totalorder %v214, %v602
  %vm707 = vcmp.eq.s32.totalorder %v214, %v605
  %vm708 = vcmp.eq.s32.totalorder %v214, %v608
  %vm709 = vcmp.eq.s32.totalorder %v214, %v611
  %vm710 = vcmp.eq.s32.totalorder %v214, %v614
  %vm711 = vcmp.eq.s32.totalorder %v214, %v617
  %vm712 = vcmp.eq.s32.totalorder %v214, %v620
  %vm713 = vcmp.eq.s32.totalorder %v214, %v623
  %vm714 = vcmp.eq.s32.totalorder %v214, %v626
  %vm715 = vcmp.eq.s32.totalorder %v214, %v629
  %vm716 = vcmp.eq.s32.totalorder %v214, %v632
  %vm717 = vcmp.eq.s32.totalorder %v214, %v635
  %vm718 = vcmp.eq.s32.totalorder %v214, %v638
  %vm719 = vcmp.eq.s32.totalorder %v214, %v641
  %vm720 = vcmp.eq.s32.totalorder %v214, %v644
  %vm721 = vcmp.eq.s32.totalorder %v214, %v647
  %vm722 = vcmp.eq.s32.totalorder %v214, %v650
  %vm723 = vcmp.eq.s32.totalorder %v214, %v653
  %vm724 = vcmp.eq.s32.totalorder %v214, %v656
  %vm725 = vcmp.eq.s32.totalorder %v214, %v659
  %vm726 = vcmp.eq.s32.totalorder %v214, %v662
  %vm727 = vmor %vm407, %vm663
  %vm728 = vmor %vm408, %vm664
  %vm729 = vmor %vm409, %vm665
  %vm730 = vmor %vm410, %vm666
  %vm731 = vmor %vm411, %vm667
  %vm732 = vmor %vm412, %vm668
  %vm733 = vmor %vm413, %vm669
  %vm734 = vmor %vm414, %vm670
  %vm735 = vmor %vm415, %vm671
  %vm736 = vmor %vm416, %vm672
  %vm737 = vmor %vm417, %vm673
  %vm738 = vmor %vm418, %vm674
  %vm739 = vmor %vm419, %vm675
  %vm740 = vmor %vm420, %vm676
  %vm741 = vmor %vm421, %vm677
  %vm742 = vmor %vm422, %vm678
  %vm743 = vmor %vm423, %vm679
  %vm744 = vmor %vm424, %vm680
  %vm745 = vmor %vm425, %vm681
  %vm746 = vmor %vm426, %vm682
  %vm747 = vmor %vm427, %vm683
  %vm748 = vmor %vm428, %vm684
  %vm749 = vmor %vm429, %vm685
  %vm750 = vmor %vm430, %vm686
  %vm751 = vmor %vm431, %vm687
  %vm752 = vmor %vm432, %vm688
  %vm753 = vmor %vm433, %vm689
  %vm754 = vmor %vm434, %vm690
  %vm755 = vmor %vm435, %vm691
  %vm756 = vmor %vm436, %vm692
  %vm757 = vmor %vm437, %vm693
  %vm758 = vmor %vm438, %vm694
  %vm759 = vmor %vm439, %vm695
  %vm760 = vmor %vm440, %vm696
  %vm761 = vmor %vm441, %vm697
  %vm762 = vmor %vm442, %vm698
  %vm763 = vmor %vm443, %vm699
  %vm764 = vmor %vm444, %vm700
  %vm765 = vmor %vm445, %vm701
  %vm766 = vmor %vm446, %vm702
  %vm767 = vmor %vm447, %vm703
  %vm768 = vmor %vm448, %vm704
  %vm769 = vmor %vm449, %vm705
  %vm770 = vmor %vm450, %vm706
  %vm771 = vmor %vm451, %vm707
  %vm772 = vmor %vm452, %vm708
  %vm773 = vmor %vm453, %vm709
  %vm774 = vmor %vm454, %vm710
  %vm775 = vmor %vm455, %vm711
  %vm776 = vmor %vm456, %vm712
  %vm777 = vmor %vm457, %vm713
  %vm778 = vmor %vm458, %vm714
  %vm779 = vmor %vm459, %vm715
  %vm780 = vmor %vm460, %vm716
  %vm781 = vmor %vm461, %vm717
  %vm782 = vmor %vm462, %vm718
  %vm783 = vmor %vm463, %vm719
  %vm784 = vmor %vm464, %vm720
  %vm785 = vmor %vm465, %vm721
  %vm786 = vmor %vm466, %vm722
  %vm787 = vmor %vm467, %vm723
  %vm788 = vmor %vm468, %vm724
  %vm789 = vmor %vm469, %vm725
  %vm790 = vmor %vm470, %vm726
  %791 = vset.pattern.permute.xlu0 2
  %792 = vperm.xlu0 %791, %v149
  %v793 = vpop.permute.xlu0 %792
  %794 = vset.pattern.permute.xlu0 2
  %795 = vperm.xlu0 %794, %v150
  %v796 = vpop.permute.xlu0 %795
  %797 = vset.pattern.permute.xlu0 2
  %798 = vperm.xlu0 %797, %v151
  %v799 = vpop.permute.xlu0 %798
  %800 = vset.pattern.permute.xlu0 2
  %801 = vperm.xlu0 %800, %v152
  %v802 = vpop.permute.xlu0 %801
  %803 = vset.pattern.permute.xlu0 2
  %804 = vperm.xlu0 %803, %v153
  %v805 = vpop.permute.xlu0 %804
  %806 = vset.pattern.permute.xlu0 2
  %807 = vperm.xlu0 %806, %v154
  %v808 = vpop.permute.xlu0 %807
  %809 = vset.pattern.permute.xlu0 2
  %810 = vperm.xlu0 %809, %v155
  %v811 = vpop.permute.xlu0 %810
  %812 = vset.pattern.permute.xlu0 2
  %813 = vperm.xlu0 %812, %v156
  %v814 = vpop.permute.xlu0 %813
  %815 = vset.pattern.permute.xlu0 2
  %816 = vperm.xlu0 %815, %v157
  %v817 = vpop.permute.xlu0 %816
  %818 = vset.pattern.permute.xlu0 2
  %819 = vperm.xlu0 %818, %v158
  %v820 = vpop.permute.xlu0 %819
  %821 = vset.pattern.permute.xlu0 2
  %822 = vperm.xlu0 %821, %v159
  %v823 = vpop.permute.xlu0 %822
  %824 = vset.pattern.permute.xlu0 2
  %825 = vperm.xlu0 %824, %v160
  %v826 = vpop.permute.xlu0 %825
  %827 = vset.pattern.permute.xlu0 2
  %828 = vperm.xlu0 %827, %v161
  %v829 = vpop.permute.xlu0 %828
  %830 = vset.pattern.permute.xlu0 2
  %831 = vperm.xlu0 %830, %v162
  %v832 = vpop.permute.xlu0 %831
  %833 = vset.pattern.permute.xlu0 2
  %834 = vperm.xlu0 %833, %v163
  %v835 = vpop.permute.xlu0 %834
  %836 = vset.pattern.permute.xlu0 2
  %837 = vperm.xlu0 %836, %v164
  %v838 = vpop.permute.xlu0 %837
  %839 = vset.pattern.permute.xlu0 2
  %840 = vperm.xlu0 %839, %v165
  %v841 = vpop.permute.xlu0 %840
  %842 = vset.pattern.permute.xlu0 2
  %843 = vperm.xlu0 %842, %v166
  %v844 = vpop.permute.xlu0 %843
  %845 = vset.pattern.permute.xlu0 2
  %846 = vperm.xlu0 %845, %v167
  %v847 = vpop.permute.xlu0 %846
  %848 = vset.pattern.permute.xlu0 2
  %849 = vperm.xlu0 %848, %v168
  %v850 = vpop.permute.xlu0 %849
  %851 = vset.pattern.permute.xlu0 2
  %852 = vperm.xlu0 %851, %v169
  %v853 = vpop.permute.xlu0 %852
  %854 = vset.pattern.permute.xlu0 2
  %855 = vperm.xlu0 %854, %v170
  %v856 = vpop.permute.xlu0 %855
  %857 = vset.pattern.permute.xlu0 2
  %858 = vperm.xlu0 %857, %v171
  %v859 = vpop.permute.xlu0 %858
  %860 = vset.pattern.permute.xlu0 2
  %861 = vperm.xlu0 %860, %v172
  %v862 = vpop.permute.xlu0 %861
  %863 = vset.pattern.permute.xlu0 2
  %864 = vperm.xlu0 %863, %v173
  %v865 = vpop.permute.xlu0 %864
  %866 = vset.pattern.permute.xlu0 2
  %867 = vperm.xlu0 %866, %v174
  %v868 = vpop.permute.xlu0 %867
  %869 = vset.pattern.permute.xlu0 2
  %870 = vperm.xlu0 %869, %v175
  %v871 = vpop.permute.xlu0 %870
  %872 = vset.pattern.permute.xlu0 2
  %873 = vperm.xlu0 %872, %v176
  %v874 = vpop.permute.xlu0 %873
  %875 = vset.pattern.permute.xlu0 2
  %876 = vperm.xlu0 %875, %v177
  %v877 = vpop.permute.xlu0 %876
  %878 = vset.pattern.permute.xlu0 2
  %879 = vperm.xlu0 %878, %v178
  %v880 = vpop.permute.xlu0 %879
  %881 = vset.pattern.permute.xlu0 2
  %882 = vperm.xlu0 %881, %v179
  %v883 = vpop.permute.xlu0 %882
  %884 = vset.pattern.permute.xlu0 2
  %885 = vperm.xlu0 %884, %v180
  %v886 = vpop.permute.xlu0 %885
  %887 = vset.pattern.permute.xlu0 2
  %888 = vperm.xlu0 %887, %v181
  %v889 = vpop.permute.xlu0 %888
  %890 = vset.pattern.permute.xlu0 2
  %891 = vperm.xlu0 %890, %v182
  %v892 = vpop.permute.xlu0 %891
  %893 = vset.pattern.permute.xlu0 2
  %894 = vperm.xlu0 %893, %v183
  %v895 = vpop.permute.xlu0 %894
  %896 = vset.pattern.permute.xlu0 2
  %897 = vperm.xlu0 %896, %v184
  %v898 = vpop.permute.xlu0 %897
  %899 = vset.pattern.permute.xlu0 2
  %900 = vperm.xlu0 %899, %v185
  %v901 = vpop.permute.xlu0 %900
  %902 = vset.pattern.permute.xlu0 2
  %903 = vperm.xlu0 %902, %v186
  %v904 = vpop.permute.xlu0 %903
  %905 = vset.pattern.permute.xlu0 2
  %906 = vperm.xlu0 %905, %v187
  %v907 = vpop.permute.xlu0 %906
  %908 = vset.pattern.permute.xlu0 2
  %909 = vperm.xlu0 %908, %v188
  %v910 = vpop.permute.xlu0 %909
  %911 = vset.pattern.permute.xlu0 2
  %912 = vperm.xlu0 %911, %v189
  %v913 = vpop.permute.xlu0 %912
  %914 = vset.pattern.permute.xlu0 2
  %915 = vperm.xlu0 %914, %v190
  %v916 = vpop.permute.xlu0 %915
  %917 = vset.pattern.permute.xlu0 2
  %918 = vperm.xlu0 %917, %v191
  %v919 = vpop.permute.xlu0 %918
  %920 = vset.pattern.permute.xlu0 2
  %921 = vperm.xlu0 %920, %v192
  %v922 = vpop.permute.xlu0 %921
  %923 = vset.pattern.permute.xlu0 2
  %924 = vperm.xlu0 %923, %v193
  %v925 = vpop.permute.xlu0 %924
  %926 = vset.pattern.permute.xlu0 2
  %927 = vperm.xlu0 %926, %v194
  %v928 = vpop.permute.xlu0 %927
  %929 = vset.pattern.permute.xlu0 2
  %930 = vperm.xlu0 %929, %v195
  %v931 = vpop.permute.xlu0 %930
  %932 = vset.pattern.permute.xlu0 2
  %933 = vperm.xlu0 %932, %v196
  %v934 = vpop.permute.xlu0 %933
  %935 = vset.pattern.permute.xlu0 2
  %936 = vperm.xlu0 %935, %v197
  %v937 = vpop.permute.xlu0 %936
  %938 = vset.pattern.permute.xlu0 2
  %939 = vperm.xlu0 %938, %v198
  %v940 = vpop.permute.xlu0 %939
  %941 = vset.pattern.permute.xlu0 2
  %942 = vperm.xlu0 %941, %v199
  %v943 = vpop.permute.xlu0 %942
  %944 = vset.pattern.permute.xlu0 2
  %945 = vperm.xlu0 %944, %v200
  %v946 = vpop.permute.xlu0 %945
  %947 = vset.pattern.permute.xlu0 2
  %948 = vperm.xlu0 %947, %v201
  %v949 = vpop.permute.xlu0 %948
  %950 = vset.pattern.permute.xlu0 2
  %951 = vperm.xlu0 %950, %v202
  %v952 = vpop.permute.xlu0 %951
  %953 = vset.pattern.permute.xlu0 2
  %954 = vperm.xlu0 %953, %v203
  %v955 = vpop.permute.xlu0 %954
  %956 = vset.pattern.permute.xlu0 2
  %957 = vperm.xlu0 %956, %v204
  %v958 = vpop.permute.xlu0 %957
  %959 = vset.pattern.permute.xlu0 2
  %960 = vperm.xlu0 %959, %v205
  %v961 = vpop.permute.xlu0 %960
  %962 = vset.pattern.permute.xlu0 2
  %963 = vperm.xlu0 %962, %v206
  %v964 = vpop.permute.xlu0 %963
  %965 = vset.pattern.permute.xlu0 2
  %966 = vperm.xlu0 %965, %v207
  %v967 = vpop.permute.xlu0 %966
  %968 = vset.pattern.permute.xlu0 2
  %969 = vperm.xlu0 %968, %v208
  %v970 = vpop.permute.xlu0 %969
  %971 = vset.pattern.permute.xlu0 2
  %972 = vperm.xlu0 %971, %v209
  %v973 = vpop.permute.xlu0 %972
  %974 = vset.pattern.permute.xlu0 2
  %975 = vperm.xlu0 %974, %v210
  %v976 = vpop.permute.xlu0 %975
  %977 = vset.pattern.permute.xlu0 2
  %978 = vperm.xlu0 %977, %v211
  %v979 = vpop.permute.xlu0 %978
  %980 = vset.pattern.permute.xlu0 2
  %981 = vperm.xlu0 %980, %v212
  %v982 = vpop.permute.xlu0 %981
  %vm983 = vcmp.eq.s32.totalorder %v214, %v793
  %vm984 = vcmp.eq.s32.totalorder %v214, %v796
  %vm985 = vcmp.eq.s32.totalorder %v214, %v799
  %vm986 = vcmp.eq.s32.totalorder %v214, %v802
  %vm987 = vcmp.eq.s32.totalorder %v214, %v805
  %vm988 = vcmp.eq.s32.totalorder %v214, %v808
  %vm989 = vcmp.eq.s32.totalorder %v214, %v811
  %vm990 = vcmp.eq.s32.totalorder %v214, %v814
  %vm991 = vcmp.eq.s32.totalorder %v214, %v817
  %vm992 = vcmp.eq.s32.totalorder %v214, %v820
  %vm993 = vcmp.eq.s32.totalorder %v214, %v823
  %vm994 = vcmp.eq.s32.totalorder %v214, %v826
  %vm995 = vcmp.eq.s32.totalorder %v214, %v829
  %vm996 = vcmp.eq.s32.totalorder %v214, %v832
  %vm997 = vcmp.eq.s32.totalorder %v214, %v835
  %vm998 = vcmp.eq.s32.totalorder %v214, %v838
  %vm999 = vcmp.eq.s32.totalorder %v214, %v841
  %vm1000 = vcmp.eq.s32.totalorder %v214, %v844
  %vm1001 = vcmp.eq.s32.totalorder %v214, %v847
  %vm1002 = vcmp.eq.s32.totalorder %v214, %v850
  %vm1003 = vcmp.eq.s32.totalorder %v214, %v853
  %vm1004 = vcmp.eq.s32.totalorder %v214, %v856
  %vm1005 = vcmp.eq.s32.totalorder %v214, %v859
  %vm1006 = vcmp.eq.s32.totalorder %v214, %v862
  %vm1007 = vcmp.eq.s32.totalorder %v214, %v865
  %vm1008 = vcmp.eq.s32.totalorder %v214, %v868
  %vm1009 = vcmp.eq.s32.totalorder %v214, %v871
  %vm1010 = vcmp.eq.s32.totalorder %v214, %v874
  %vm1011 = vcmp.eq.s32.totalorder %v214, %v877
  %vm1012 = vcmp.eq.s32.totalorder %v214, %v880
  %vm1013 = vcmp.eq.s32.totalorder %v214, %v883
  %vm1014 = vcmp.eq.s32.totalorder %v214, %v886
  %vm1015 = vcmp.eq.s32.totalorder %v214, %v889
  %vm1016 = vcmp.eq.s32.totalorder %v214, %v892
  %vm1017 = vcmp.eq.s32.totalorder %v214, %v895
  %vm1018 = vcmp.eq.s32.totalorder %v214, %v898
  %vm1019 = vcmp.eq.s32.totalorder %v214, %v901
  %vm1020 = vcmp.eq.s32.totalorder %v214, %v904
  %vm1021 = vcmp.eq.s32.totalorder %v214, %v907
  %vm1022 = vcmp.eq.s32.totalorder %v214, %v910
  %vm1023 = vcmp.eq.s32.totalorder %v214, %v913
  %vm1024 = vcmp.eq.s32.totalorder %v214, %v916
  %vm1025 = vcmp.eq.s32.totalorder %v214, %v919
  %vm1026 = vcmp.eq.s32.totalorder %v214, %v922
  %vm1027 = vcmp.eq.s32.totalorder %v214, %v925
  %vm1028 = vcmp.eq.s32.totalorder %v214, %v928
  %vm1029 = vcmp.eq.s32.totalorder %v214, %v931
  %vm1030 = vcmp.eq.s32.totalorder %v214, %v934
  %vm1031 = vcmp.eq.s32.totalorder %v214, %v937
  %vm1032 = vcmp.eq.s32.totalorder %v214, %v940
  %vm1033 = vcmp.eq.s32.totalorder %v214, %v943
  %vm1034 = vcmp.eq.s32.totalorder %v214, %v946
  %vm1035 = vcmp.eq.s32.totalorder %v214, %v949
  %vm1036 = vcmp.eq.s32.totalorder %v214, %v952
  %vm1037 = vcmp.eq.s32.totalorder %v214, %v955
  %vm1038 = vcmp.eq.s32.totalorder %v214, %v958
  %vm1039 = vcmp.eq.s32.totalorder %v214, %v961
  %vm1040 = vcmp.eq.s32.totalorder %v214, %v964
  %vm1041 = vcmp.eq.s32.totalorder %v214, %v967
  %vm1042 = vcmp.eq.s32.totalorder %v214, %v970
  %vm1043 = vcmp.eq.s32.totalorder %v214, %v973
  %vm1044 = vcmp.eq.s32.totalorder %v214, %v976
  %vm1045 = vcmp.eq.s32.totalorder %v214, %v979
  %vm1046 = vcmp.eq.s32.totalorder %v214, %v982
  %vm1047 = vmor %vm727, %vm983
  %vm1048 = vmor %vm728, %vm984
  %vm1049 = vmor %vm729, %vm985
  %vm1050 = vmor %vm730, %vm986
  %vm1051 = vmor %vm731, %vm987
  %vm1052 = vmor %vm732, %vm988
  %vm1053 = vmor %vm733, %vm989
  %vm1054 = vmor %vm734, %vm990
  %vm1055 = vmor %vm735, %vm991
  %vm1056 = vmor %vm736, %vm992
  %vm1057 = vmor %vm737, %vm993
  %vm1058 = vmor %vm738, %vm994
  %vm1059 = vmor %vm739, %vm995
  %vm1060 = vmor %vm740, %vm996
  %vm1061 = vmor %vm741, %vm997
  %vm1062 = vmor %vm742, %vm998
  %vm1063 = vmor %vm743, %vm999
  %vm1064 = vmor %vm744, %vm1000
  %vm1065 = vmor %vm745, %vm1001
  %vm1066 = vmor %vm746, %vm1002
  %vm1067 = vmor %vm747, %vm1003
  %vm1068 = vmor %vm748, %vm1004
  %vm1069 = vmor %vm749, %vm1005
  %vm1070 = vmor %vm750, %vm1006
  %vm1071 = vmor %vm751, %vm1007
  %vm1072 = vmor %vm752, %vm1008
  %vm1073 = vmor %vm753, %vm1009
  %vm1074 = vmor %vm754, %vm1010
  %vm1075 = vmor %vm755, %vm1011
  %vm1076 = vmor %vm756, %vm1012
  %vm1077 = vmor %vm757, %vm1013
  %vm1078 = vmor %vm758, %vm1014
  %vm1079 = vmor %vm759, %vm1015
  %vm1080 = vmor %vm760, %vm1016
  %vm1081 = vmor %vm761, %vm1017
  %vm1082 = vmor %vm762, %vm1018
  %vm1083 = vmor %vm763, %vm1019
  %vm1084 = vmor %vm764, %vm1020
  %vm1085 = vmor %vm765, %vm1021
  %vm1086 = vmor %vm766, %vm1022
  %vm1087 = vmor %vm767, %vm1023
  %vm1088 = vmor %vm768, %vm1024
  %vm1089 = vmor %vm769, %vm1025
  %vm1090 = vmor %vm770, %vm1026
  %vm1091 = vmor %vm771, %vm1027
  %vm1092 = vmor %vm772, %vm1028
  %vm1093 = vmor %vm773, %vm1029
  %vm1094 = vmor %vm774, %vm1030
  %vm1095 = vmor %vm775, %vm1031
  %vm1096 = vmor %vm776, %vm1032
  %vm1097 = vmor %vm777, %vm1033
  %vm1098 = vmor %vm778, %vm1034
  %vm1099 = vmor %vm779, %vm1035
  %vm1100 = vmor %vm780, %vm1036
  %vm1101 = vmor %vm781, %vm1037
  %vm1102 = vmor %vm782, %vm1038
  %vm1103 = vmor %vm783, %vm1039
  %vm1104 = vmor %vm784, %vm1040
  %vm1105 = vmor %vm785, %vm1041
  %vm1106 = vmor %vm786, %vm1042
  %vm1107 = vmor %vm787, %vm1043
  %vm1108 = vmor %vm788, %vm1044
  %vm1109 = vmor %vm789, %vm1045
  %vm1110 = vmor %vm790, %vm1046
  %v1111 = vsel %vm1047, 1, 0
  %v1112 = vsel %vm1048, 1, 0
  %v1113 = vsel %vm1049, 1, 0
  %v1114 = vsel %vm1050, 1, 0
  %v1115 = vsel %vm1051, 1, 0
  %v1116 = vsel %vm1052, 1, 0
  %v1117 = vsel %vm1053, 1, 0
  %v1118 = vsel %vm1054, 1, 0
  %v1119 = vsel %vm1055, 1, 0
  %v1120 = vsel %vm1056, 1, 0
  %v1121 = vsel %vm1057, 1, 0
  %v1122 = vsel %vm1058, 1, 0
  %v1123 = vsel %vm1059, 1, 0
  %v1124 = vsel %vm1060, 1, 0
  %v1125 = vsel %vm1061, 1, 0
  %v1126 = vsel %vm1062, 1, 0
  %v1127 = vsel %vm1063, 1, 0
  %v1128 = vsel %vm1064, 1, 0
  %v1129 = vsel %vm1065, 1, 0
  %v1130 = vsel %vm1066, 1, 0
  %v1131 = vsel %vm1067, 1, 0
  %v1132 = vsel %vm1068, 1, 0
  %v1133 = vsel %vm1069, 1, 0
  %v1134 = vsel %vm1070, 1, 0
  %v1135 = vsel %vm1071, 1, 0
  %v1136 = vsel %vm1072, 1, 0
  %v1137 = vsel %vm1073, 1, 0
  %v1138 = vsel %vm1074, 1, 0
  %v1139 = vsel %vm1075, 1, 0
  %v1140 = vsel %vm1076, 1, 0
  %v1141 = vsel %vm1077, 1, 0
  %v1142 = vsel %vm1078, 1, 0
  %v1143 = vsel %vm1079, 1, 0
  %v1144 = vsel %vm1080, 1, 0
  %v1145 = vsel %vm1081, 1, 0
  %v1146 = vsel %vm1082, 1, 0
  %v1147 = vsel %vm1083, 1, 0
  %v1148 = vsel %vm1084, 1, 0
  %v1149 = vsel %vm1085, 1, 0
  %v1150 = vsel %vm1086, 1, 0
  %v1151 = vsel %vm1087, 1, 0
  %v1152 = vsel %vm1088, 1, 0
  %v1153 = vsel %vm1089, 1, 0
  %v1154 = vsel %vm1090, 1, 0
  %v1155 = vsel %vm1091, 1, 0
  %v1156 = vsel %vm1092, 1, 0
  %v1157 = vsel %vm1093, 1, 0
  %v1158 = vsel %vm1094, 1, 0
  %v1159 = vsel %vm1095, 1, 0
  %v1160 = vsel %vm1096, 1, 0
  %v1161 = vsel %vm1097, 1, 0
  %v1162 = vsel %vm1098, 1, 0
  %v1163 = vsel %vm1099, 1, 0
  %v1164 = vsel %vm1100, 1, 0
  %v1165 = vsel %vm1101, 1, 0
  %v1166 = vsel %vm1102, 1, 0
  %v1167 = vsel %vm1103, 1, 0
  %v1168 = vsel %vm1104, 1, 0
  %v1169 = vsel %vm1105, 1, 0
  %v1170 = vsel %vm1106, 1, 0
  %v1171 = vsel %vm1107, 1, 0
  %v1172 = vsel %vm1108, 1, 0
  %v1173 = vsel %vm1109, 1, 0
  %v1174 = vsel %vm1110, 1, 0
  %v1175 = vcvt.s32.f32 %v1111
  %v1176 = vcvt.s32.f32 %v1112
  %v1177 = vcvt.s32.f32 %v1113
  %v1178 = vcvt.s32.f32 %v1114
  %v1179 = vcvt.s32.f32 %v1115
  %v1180 = vcvt.s32.f32 %v1116
  %v1181 = vcvt.s32.f32 %v1117
  %v1182 = vcvt.s32.f32 %v1118
  %v1183 = vcvt.s32.f32 %v1119
  %v1184 = vcvt.s32.f32 %v1120
  %v1185 = vcvt.s32.f32 %v1121
  %v1186 = vcvt.s32.f32 %v1122
  %v1187 = vcvt.s32.f32 %v1123
  %v1188 = vcvt.s32.f32 %v1124
  %v1189 = vcvt.s32.f32 %v1125
  %v1190 = vcvt.s32.f32 %v1126
  %v1191 = vcvt.s32.f32 %v1127
  %v1192 = vcvt.s32.f32 %v1128
  %v1193 = vcvt.s32.f32 %v1129
  %v1194 = vcvt.s32.f32 %v1130
  %v1195 = vcvt.s32.f32 %v1131
  %v1196 = vcvt.s32.f32 %v1132
  %v1197 = vcvt.s32.f32 %v1133
  %v1198 = vcvt.s32.f32 %v1134
  %v1199 = vcvt.s32.f32 %v1135
  %v1200 = vcvt.s32.f32 %v1136
  %v1201 = vcvt.s32.f32 %v1137
  %v1202 = vcvt.s32.f32 %v1138
  %v1203 = vcvt.s32.f32 %v1139
  %v1204 = vcvt.s32.f32 %v1140
  %v1205 = vcvt.s32.f32 %v1141
  %v1206 = vcvt.s32.f32 %v1142
  %v1207 = vcvt.s32.f32 %v1143
  %v1208 = vcvt.s32.f32 %v1144
  %v1209 = vcvt.s32.f32 %v1145
  %v1210 = vcvt.s32.f32 %v1146
  %v1211 = vcvt.s32.f32 %v1147
  %v1212 = vcvt.s32.f32 %v1148
  %v1213 = vcvt.s32.f32 %v1149
  %v1214 = vcvt.s32.f32 %v1150
  %v1215 = vcvt.s32.f32 %v1151
  %v1216 = vcvt.s32.f32 %v1152
  %v1217 = vcvt.s32.f32 %v1153
  %v1218 = vcvt.s32.f32 %v1154
  %v1219 = vcvt.s32.f32 %v1155
  %v1220 = vcvt.s32.f32 %v1156
  %v1221 = vcvt.s32.f32 %v1157
  %v1222 = vcvt.s32.f32 %v1158
  %v1223 = vcvt.s32.f32 %v1159
  %v1224 = vcvt.s32.f32 %v1160
  %v1225 = vcvt.s32.f32 %v1161
  %v1226 = vcvt.s32.f32 %v1162
  %v1227 = vcvt.s32.f32 %v1163
  %v1228 = vcvt.s32.f32 %v1164
  %v1229 = vcvt.s32.f32 %v1165
  %v1230 = vcvt.s32.f32 %v1166
  %v1231 = vcvt.s32.f32 %v1167
  %v1232 = vcvt.s32.f32 %v1168
  %v1233 = vcvt.s32.f32 %v1169
  %v1234 = vcvt.s32.f32 %v1170
  %v1235 = vcvt.s32.f32 %v1171
  %v1236 = vcvt.s32.f32 %v1172
  %v1237 = vcvt.s32.f32 %v1173
  %v1238 = vcvt.s32.f32 %v1174
  %v1239 = vpack.c.bf16 %v1176, %v1175
  %v1240 = vpack.c.bf16 %v1178, %v1177
  %v1241 = vpack.c.bf16 %v1180, %v1179
  %v1242 = vpack.c.bf16 %v1182, %v1181
  %v1243 = vpack.c.bf16 %v1184, %v1183
  %v1244 = vpack.c.bf16 %v1186, %v1185
  %v1245 = vpack.c.bf16 %v1188, %v1187
  %v1246 = vpack.c.bf16 %v1190, %v1189
  %v1247 = vpack.c.bf16 %v1192, %v1191
  %v1248 = vpack.c.bf16 %v1194, %v1193
  %v1249 = vpack.c.bf16 %v1196, %v1195
  %v1250 = vpack.c.bf16 %v1198, %v1197
  %v1251 = vpack.c.bf16 %v1200, %v1199
  %v1252 = vpack.c.bf16 %v1202, %v1201
  %v1253 = vpack.c.bf16 %v1204, %v1203
  %v1254 = vpack.c.bf16 %v1206, %v1205
  %v1255 = vpack.c.bf16 %v1208, %v1207
  %v1256 = vpack.c.bf16 %v1210, %v1209
  %v1257 = vpack.c.bf16 %v1212, %v1211
  %v1258 = vpack.c.bf16 %v1214, %v1213
  %v1259 = vpack.c.bf16 %v1216, %v1215
  %v1260 = vpack.c.bf16 %v1218, %v1217
  %v1261 = vpack.c.bf16 %v1220, %v1219
  %v1262 = vpack.c.bf16 %v1222, %v1221
  %v1263 = vpack.c.bf16 %v1224, %v1223
  %v1264 = vpack.c.bf16 %v1226, %v1225
  %v1265 = vpack.c.bf16 %v1228, %v1227
  %v1266 = vpack.c.bf16 %v1230, %v1229
  %v1267 = vpack.c.bf16 %v1232, %v1231
  %v1268 = vpack.c.bf16 %v1234, %v1233
  %v1269 = vpack.c.bf16 %v1236, %v1235
  %v1270 = vpack.c.bf16 %v1238, %v1237
  %v1271 = vld [vmem:[%s1] sm:$0xff]
  %v1272 = vld [vmem:[%s1 + $0x8] sm:$0xff]
  %v1273 = vld [vmem:[%s1 + $0x10] sm:$0xff]
  %v1274 = vld [vmem:[%s1 + $0x18] sm:$0xff]
  %v1275 = vld [vmem:[%s2] sm:$0x3]
  %v1277 = vlaneseq
  %v1278 = vshrl.u32 %v1277, 7
  %v1279 = vsub.s32 0, %v1278
  %v1280 = vrot.slane %v1275, %v1279
  %v1281 = vlaneseq
  %v1282 = vshrl.u32 %v1281, 7
  %v1283 = vsub.s32 1, %v1282
  %v1284 = vrot.slane %v1275, %v1283
  %v1291 = vunpack.c.l.b16 %v1271
  %v1292 = vunpack.c.h.b16 %v1271
  %v1293 = vunpack.c.l.b16 %v1272
  %v1294 = vunpack.c.h.b16 %v1272
  %v1295 = vunpack.c.l.b16 %v1273
  %v1296 = vunpack.c.h.b16 %v1273
  %v1297 = vunpack.c.l.b16 %v1274
  %v1298 = vunpack.c.h.b16 %v1274
  %v1299 = vpack.c.b16 %v1293, %v1291
  %v1300 = vpack.c.b16 %v1294, %v1292
  %v1301 = vpack.c.b16 %v1297, %v1295
  %v1302 = vpack.c.b16 %v1298, %v1296
  %vm1307 = vcmask 261120
  %v1309 = vsel %vm1307, %v1239, 0
  %v1312 = vsel %vm1307, %v1240, 0
  %v1315 = vsel %vm1307, %v1241, 0
  %v1318 = vsel %vm1307, %v1242, 0
  %v1321 = vsel %vm1307, %v1243, 0
  %v1324 = vsel %vm1307, %v1244, 0
  %v1327 = vsel %vm1307, %v1245, 0
  %v1330 = vsel %vm1307, %v1246, 0
  %v1333 = vsel %vm1307, %v1247, 0
  %v1336 = vsel %vm1307, %v1248, 0
  %v1339 = vsel %vm1307, %v1249, 0
  %v1342 = vsel %vm1307, %v1250, 0
  %v1345 = vsel %vm1307, %v1251, 0
  %v1348 = vsel %vm1307, %v1252, 0
  %v1351 = vsel %vm1307, %v1253, 0
  %v1354 = vsel %vm1307, %v1254, 0
  %v1357 = vsel %vm1307, %v1255, 0
  %v1360 = vsel %vm1307, %v1256, 0
  %v1363 = vsel %vm1307, %v1257, 0
  %v1366 = vsel %vm1307, %v1258, 0
  %v1369 = vsel %vm1307, %v1259, 0
  %v1372 = vsel %vm1307, %v1260, 0
  %v1375 = vsel %vm1307, %v1261, 0
  %v1378 = vsel %vm1307, %v1262, 0
  %v1381 = vsel %vm1307, %v1263, 0
  %v1384 = vsel %vm1307, %v1264, 0
  %v1387 = vsel %vm1307, %v1265, 0
  %v1390 = vsel %vm1307, %v1266, 0
  %v1393 = vsel %vm1307, %v1267, 0
  %v1396 = vsel %vm1307, %v1268, 0
  %v1399 = vsel %vm1307, %v1269, 0
  %v1402 = vsel %vm1307, %v1270, 0
  %1404 = vmatprep.subr.bf16.mxu0 0
  %1405 = vmatpush1.bf16.msra.mxu0 0
  %1406 = vmatprep.subr.bf16.mxu0 0
  %1407 = vmatpush1.bf16.msra.mxu0 0
  %1408 = vmatprep.subr.bf16.mxu0 0
  %1409 = vmatpush1.bf16.msra.mxu0 0
  %1410 = vmatprep.subr.bf16.mxu0 0
  %1411 = vmatpush1.bf16.msra.mxu0 0
  %1412 = vmatprep.subr.bf16.mxu0 0
  %1413 = vmatpush1.bf16.msra.mxu0 0
  %1414 = vmatprep.subr.bf16.mxu0 0
  %1415 = vmatpush1.bf16.msra.mxu0 0
  %1416 = vmatprep.subr.bf16.mxu0 %v1302
  %1417 = vmatpush1.bf16.msra.mxu0 %v1301
  %1418 = vmatprep.subr.bf16.mxu0 %v1300
  %1419 = vmatpush1.bf16.msra.mxu0 %v1299
  %1420 = vmatprep.subr.bf16.mxu0 0
  %1421 = vmatpush2.bf16.msra.mxu0 0
  %1422 = vmatprep.subr.bf16.mxu0 0
  %1423 = vmatpush2.bf16.msra.mxu0 0
  %1424 = vmatprep.subr.bf16.mxu0 0
  %1425 = vmatpush2.bf16.msra.mxu0 0
  %1426 = vmatprep.subr.bf16.mxu0 0
  %1427 = vmatpush2.bf16.msra.mxu0 0
  %1428 = vmatprep.subr.bf16.mxu0 0
  %1429 = vmatpush2.bf16.msra.mxu0 0
  %1430 = vmatprep.subr.bf16.mxu0 0
  %1431 = vmatpush2.bf16.msra.mxu0 0
  %1432 = vmatprep.subr.bf16.mxu0 0
  %1433 = vmatpush2.bf16.msra.mxu0 0
  %1434 = vmatprep.subr.bf16.mxu0 0
  %1435 = vmatpush2.bf16.msra.mxu0 0
  %1436 = vmatprep.mubr.bf16.mxu0 0
  %1437 = vmatmul.mubr.bf16.gmra.mxu0 %v1309
  %v1438 = vpop.f32.mrf.mxu0
  %v1439 = vadd.f32 %v1280, %v1438
  %v1440 = vpop.f32.mrf.mxu0
  %v1441 = vadd.f32 %v1284, %v1440
  %v1442 = vpop.f32.mrf.mxu0
  %v1443 = vadd.f32 %v1280, %v1442
  %v1444 = vpop.f32.mrf.mxu0
  %v1445 = vadd.f32 %v1284, %v1444
  %1446 = vmatprep.mubr.bf16.mxu0 0
  %1447 = vmatmul.mubr.bf16.gmra.mxu0 %v1312
  %v1448 = vpop.f32.mrf.mxu0
  %v1449 = vadd.f32 %v1280, %v1448
  %v1450 = vpop.f32.mrf.mxu0
  %v1451 = vadd.f32 %v1284, %v1450
  %v1452 = vpop.f32.mrf.mxu0
  %v1453 = vadd.f32 %v1280, %v1452
  %v1454 = vpop.f32.mrf.mxu0
  %v1455 = vadd.f32 %v1284, %v1454
  %1456 = vmatprep.mubr.bf16.mxu0 0
  %1457 = vmatmul.mubr.bf16.gmra.mxu0 %v1315
  %v1458 = vpop.f32.mrf.mxu0
  %v1459 = vadd.f32 %v1280, %v1458
  %v1460 = vpop.f32.mrf.mxu0
  %v1461 = vadd.f32 %v1284, %v1460
  %v1462 = vpop.f32.mrf.mxu0
  %v1463 = vadd.f32 %v1280, %v1462
  %v1464 = vpop.f32.mrf.mxu0
  %v1465 = vadd.f32 %v1284, %v1464
  %1466 = vmatprep.mubr.bf16.mxu0 0
  %1467 = vmatmul.mubr.bf16.gmra.mxu0 %v1318
  %v1468 = vpop.f32.mrf.mxu0
  %v1469 = vadd.f32 %v1280, %v1468
  %v1470 = vpop.f32.mrf.mxu0
  %v1471 = vadd.f32 %v1284, %v1470
  %v1472 = vpop.f32.mrf.mxu0
  %v1473 = vadd.f32 %v1280, %v1472
  %v1474 = vpop.f32.mrf.mxu0
  %v1475 = vadd.f32 %v1284, %v1474
  %1476 = vmatprep.mubr.bf16.mxu0 0
  %1477 = vmatmul.mubr.bf16.gmra.mxu0 %v1321
  %v1478 = vpop.f32.mrf.mxu0
  %v1479 = vadd.f32 %v1280, %v1478
  %v1480 = vpop.f32.mrf.mxu0
  %v1481 = vadd.f32 %v1284, %v1480
  %v1482 = vpop.f32.mrf.mxu0
  %v1483 = vadd.f32 %v1280, %v1482
  %v1484 = vpop.f32.mrf.mxu0
  %v1485 = vadd.f32 %v1284, %v1484
  %1486 = vmatprep.mubr.bf16.mxu0 0
  %1487 = vmatmul.mubr.bf16.gmra.mxu0 %v1324
  %v1488 = vpop.f32.mrf.mxu0
  %v1489 = vadd.f32 %v1280, %v1488
  %v1490 = vpop.f32.mrf.mxu0
  %v1491 = vadd.f32 %v1284, %v1490
  %v1492 = vpop.f32.mrf.mxu0
  %v1493 = vadd.f32 %v1280, %v1492
  %v1494 = vpop.f32.mrf.mxu0
  %v1495 = vadd.f32 %v1284, %v1494
  %1496 = vmatprep.mubr.bf16.mxu0 0
  %1497 = vmatmul.mubr.bf16.gmra.mxu0 %v1327
  %v1498 = vpop.f32.mrf.mxu0
  %v1499 = vadd.f32 %v1280, %v1498
  %v1500 = vpop.f32.mrf.mxu0
  %v1501 = vadd.f32 %v1284, %v1500
  %v1502 = vpop.f32.mrf.mxu0
  %v1503 = vadd.f32 %v1280, %v1502
  %v1504 = vpop.f32.mrf.mxu0
  %v1505 = vadd.f32 %v1284, %v1504
  %1506 = vmatprep.mubr.bf16.mxu0 0
  %1507 = vmatmul.mubr.bf16.gmra.mxu0 %v1330
  %v1508 = vpop.f32.mrf.mxu0
  %v1509 = vadd.f32 %v1280, %v1508
  %v1510 = vpop.f32.mrf.mxu0
  %v1511 = vadd.f32 %v1284, %v1510
  %v1512 = vpop.f32.mrf.mxu0
  %v1513 = vadd.f32 %v1280, %v1512
  %v1514 = vpop.f32.mrf.mxu0
  %v1515 = vadd.f32 %v1284, %v1514
  %1516 = vmatprep.mubr.bf16.mxu0 0
  %1517 = vmatmul.mubr.bf16.gmra.mxu0 %v1333
  %v1518 = vpop.f32.mrf.mxu0
  %v1519 = vadd.f32 %v1280, %v1518
  %v1520 = vpop.f32.mrf.mxu0
  %v1521 = vadd.f32 %v1284, %v1520
  %v1522 = vpop.f32.mrf.mxu0
  %v1523 = vadd.f32 %v1280, %v1522
  %v1524 = vpop.f32.mrf.mxu0
  %v1525 = vadd.f32 %v1284, %v1524
  %1526 = vmatprep.mubr.bf16.mxu0 0
  %1527 = vmatmul.mubr.bf16.gmra.mxu0 %v1336
  %v1528 = vpop.f32.mrf.mxu0
  %v1529 = vadd.f32 %v1280, %v1528
  %v1530 = vpop.f32.mrf.mxu0
  %v1531 = vadd.f32 %v1284, %v1530
  %v1532 = vpop.f32.mrf.mxu0
  %v1533 = vadd.f32 %v1280, %v1532
  %v1534 = vpop.f32.mrf.mxu0
  %v1535 = vadd.f32 %v1284, %v1534
  %1536 = vmatprep.mubr.bf16.mxu0 0
  %1537 = vmatmul.mubr.bf16.gmra.mxu0 %v1339
  %v1538 = vpop.f32.mrf.mxu0
  %v1539 = vadd.f32 %v1280, %v1538
  %v1540 = vpop.f32.mrf.mxu0
  %v1541 = vadd.f32 %v1284, %v1540
  %v1542 = vpop.f32.mrf.mxu0
  %v1543 = vadd.f32 %v1280, %v1542
  %v1544 = vpop.f32.mrf.mxu0
  %v1545 = vadd.f32 %v1284, %v1544
  %1546 = vmatprep.mubr.bf16.mxu0 0
  %1547 = vmatmul.mubr.bf16.gmra.mxu0 %v1342
  %v1548 = vpop.f32.mrf.mxu0
  %v1549 = vadd.f32 %v1280, %v1548
  %v1550 = vpop.f32.mrf.mxu0
  %v1551 = vadd.f32 %v1284, %v1550
  %v1552 = vpop.f32.mrf.mxu0
  %v1553 = vadd.f32 %v1280, %v1552
  %v1554 = vpop.f32.mrf.mxu0
  %v1555 = vadd.f32 %v1284, %v1554
  %1556 = vmatprep.mubr.bf16.mxu0 0
  %1557 = vmatmul.mubr.bf16.gmra.mxu0 %v1345
  %v1558 = vpop.f32.mrf.mxu0
  %v1559 = vadd.f32 %v1280, %v1558
  %v1560 = vpop.f32.mrf.mxu0
  %v1561 = vadd.f32 %v1284, %v1560
  %v1562 = vpop.f32.mrf.mxu0
  %v1563 = vadd.f32 %v1280, %v1562
  %v1564 = vpop.f32.mrf.mxu0
  %v1565 = vadd.f32 %v1284, %v1564
  %1566 = vmatprep.mubr.bf16.mxu0 0
  %1567 = vmatmul.mubr.bf16.gmra.mxu0 %v1348
  %v1568 = vpop.f32.mrf.mxu0
  %v1569 = vadd.f32 %v1280, %v1568
  %v1570 = vpop.f32.mrf.mxu0
  %v1571 = vadd.f32 %v1284, %v1570
  %v1572 = vpop.f32.mrf.mxu0
  %v1573 = vadd.f32 %v1280, %v1572
  %v1574 = vpop.f32.mrf.mxu0
  %v1575 = vadd.f32 %v1284, %v1574
  %1576 = vmatprep.mubr.bf16.mxu0 0
  %1577 = vmatmul.mubr.bf16.gmra.mxu0 %v1351
  %v1578 = vpop.f32.mrf.mxu0
  %v1579 = vadd.f32 %v1280, %v1578
  %v1580 = vpop.f32.mrf.mxu0
  %v1581 = vadd.f32 %v1284, %v1580
  %v1582 = vpop.f32.mrf.mxu0
  %v1583 = vadd.f32 %v1280, %v1582
  %v1584 = vpop.f32.mrf.mxu0
  %v1585 = vadd.f32 %v1284, %v1584
  %1586 = vmatprep.mubr.bf16.mxu0 0
  %1587 = vmatmul.mubr.bf16.gmra.mxu0 %v1354
  %v1588 = vpop.f32.mrf.mxu0
  %v1589 = vadd.f32 %v1280, %v1588
  %v1590 = vpop.f32.mrf.mxu0
  %v1591 = vadd.f32 %v1284, %v1590
  %v1592 = vpop.f32.mrf.mxu0
  %v1593 = vadd.f32 %v1280, %v1592
  %v1594 = vpop.f32.mrf.mxu0
  %v1595 = vadd.f32 %v1284, %v1594
  %1596 = vmatprep.mubr.bf16.mxu0 0
  %1597 = vmatmul.mubr.bf16.gmra.mxu0 %v1357
  %v1598 = vpop.f32.mrf.mxu0
  %v1599 = vadd.f32 %v1280, %v1598
  %v1600 = vpop.f32.mrf.mxu0
  %v1601 = vadd.f32 %v1284, %v1600
  %v1602 = vpop.f32.mrf.mxu0
  %v1603 = vadd.f32 %v1280, %v1602
  %v1604 = vpop.f32.mrf.mxu0
  %v1605 = vadd.f32 %v1284, %v1604
  %1606 = vmatprep.mubr.bf16.mxu0 0
  %1607 = vmatmul.mubr.bf16.gmra.mxu0 %v1360
  %v1608 = vpop.f32.mrf.mxu0
  %v1609 = vadd.f32 %v1280, %v1608
  %v1610 = vpop.f32.mrf.mxu0
  %v1611 = vadd.f32 %v1284, %v1610
  %v1612 = vpop.f32.mrf.mxu0
  %v1613 = vadd.f32 %v1280, %v1612
  %v1614 = vpop.f32.mrf.mxu0
  %v1615 = vadd.f32 %v1284, %v1614
  %1616 = vmatprep.mubr.bf16.mxu0 0
  %1617 = vmatmul.mubr.bf16.gmra.mxu0 %v1363
  %v1618 = vpop.f32.mrf.mxu0
  %v1619 = vadd.f32 %v1280, %v1618
  %v1620 = vpop.f32.mrf.mxu0
  %v1621 = vadd.f32 %v1284, %v1620
  %v1622 = vpop.f32.mrf.mxu0
  %v1623 = vadd.f32 %v1280, %v1622
  %v1624 = vpop.f32.mrf.mxu0
  %v1625 = vadd.f32 %v1284, %v1624
  %1626 = vmatprep.mubr.bf16.mxu0 0
  %1627 = vmatmul.mubr.bf16.gmra.mxu0 %v1366
  %v1628 = vpop.f32.mrf.mxu0
  %v1629 = vadd.f32 %v1280, %v1628
  %v1630 = vpop.f32.mrf.mxu0
  %v1631 = vadd.f32 %v1284, %v1630
  %v1632 = vpop.f32.mrf.mxu0
  %v1633 = vadd.f32 %v1280, %v1632
  %v1634 = vpop.f32.mrf.mxu0
  %v1635 = vadd.f32 %v1284, %v1634
  %1636 = vmatprep.mubr.bf16.mxu0 0
  %1637 = vmatmul.mubr.bf16.gmra.mxu0 %v1369
  %v1638 = vpop.f32.mrf.mxu0
  %v1639 = vadd.f32 %v1280, %v1638
  %v1640 = vpop.f32.mrf.mxu0
  %v1641 = vadd.f32 %v1284, %v1640
  %v1642 = vpop.f32.mrf.mxu0
  %v1643 = vadd.f32 %v1280, %v1642
  %v1644 = vpop.f32.mrf.mxu0
  %v1645 = vadd.f32 %v1284, %v1644
  %1646 = vmatprep.mubr.bf16.mxu0 0
  %1647 = vmatmul.mubr.bf16.gmra.mxu0 %v1372
  %v1648 = vpop.f32.mrf.mxu0
  %v1649 = vadd.f32 %v1280, %v1648
  %v1650 = vpop.f32.mrf.mxu0
  %v1651 = vadd.f32 %v1284, %v1650
  %v1652 = vpop.f32.mrf.mxu0
  %v1653 = vadd.f32 %v1280, %v1652
  %v1654 = vpop.f32.mrf.mxu0
  %v1655 = vadd.f32 %v1284, %v1654
  %1656 = vmatprep.mubr.bf16.mxu0 0
  %1657 = vmatmul.mubr.bf16.gmra.mxu0 %v1375
  %v1658 = vpop.f32.mrf.mxu0
  %v1659 = vadd.f32 %v1280, %v1658
  %v1660 = vpop.f32.mrf.mxu0
  %v1661 = vadd.f32 %v1284, %v1660
  %v1662 = vpop.f32.mrf.mxu0
  %v1663 = vadd.f32 %v1280, %v1662
  %v1664 = vpop.f32.mrf.mxu0
  %v1665 = vadd.f32 %v1284, %v1664
  %1666 = vmatprep.mubr.bf16.mxu0 0
  %1667 = vmatmul.mubr.bf16.gmra.mxu0 %v1378
  %v1668 = vpop.f32.mrf.mxu0
  %v1669 = vadd.f32 %v1280, %v1668
  %v1670 = vpop.f32.mrf.mxu0
  %v1671 = vadd.f32 %v1284, %v1670
  %v1672 = vpop.f32.mrf.mxu0
  %v1673 = vadd.f32 %v1280, %v1672
  %v1674 = vpop.f32.mrf.mxu0
  %v1675 = vadd.f32 %v1284, %v1674
  %1676 = vmatprep.mubr.bf16.mxu0 0
  %1677 = vmatmul.mubr.bf16.gmra.mxu0 %v1381
  %v1678 = vpop.f32.mrf.mxu0
  %v1679 = vadd.f32 %v1280, %v1678
  %v1680 = vpop.f32.mrf.mxu0
  %v1681 = vadd.f32 %v1284, %v1680
  %v1682 = vpop.f32.mrf.mxu0
  %v1683 = vadd.f32 %v1280, %v1682
  %v1684 = vpop.f32.mrf.mxu0
  %v1685 = vadd.f32 %v1284, %v1684
  %1686 = vmatprep.mubr.bf16.mxu0 0
  %1687 = vmatmul.mubr.bf16.gmra.mxu0 %v1384
  %v1688 = vpop.f32.mrf.mxu0
  %v1689 = vadd.f32 %v1280, %v1688
  %v1690 = vpop.f32.mrf.mxu0
  %v1691 = vadd.f32 %v1284, %v1690
  %v1692 = vpop.f32.mrf.mxu0
  %v1693 = vadd.f32 %v1280, %v1692
  %v1694 = vpop.f32.mrf.mxu0
  %v1695 = vadd.f32 %v1284, %v1694
  %1696 = vmatprep.mubr.bf16.mxu0 0
  %1697 = vmatmul.mubr.bf16.gmra.mxu0 %v1387
  %v1698 = vpop.f32.mrf.mxu0
  %v1699 = vadd.f32 %v1280, %v1698
  %v1700 = vpop.f32.mrf.mxu0
  %v1701 = vadd.f32 %v1284, %v1700
  %v1702 = vpop.f32.mrf.mxu0
  %v1703 = vadd.f32 %v1280, %v1702
  %v1704 = vpop.f32.mrf.mxu0
  %v1705 = vadd.f32 %v1284, %v1704
  %1706 = vmatprep.mubr.bf16.mxu0 0
  %1707 = vmatmul.mubr.bf16.gmra.mxu0 %v1390
  %v1708 = vpop.f32.mrf.mxu0
  %v1709 = vadd.f32 %v1280, %v1708
  %v1710 = vpop.f32.mrf.mxu0
  %v1711 = vadd.f32 %v1284, %v1710
  %v1712 = vpop.f32.mrf.mxu0
  %v1713 = vadd.f32 %v1280, %v1712
  %v1714 = vpop.f32.mrf.mxu0
  %v1715 = vadd.f32 %v1284, %v1714
  %1716 = vmatprep.mubr.bf16.mxu0 0
  %1717 = vmatmul.mubr.bf16.gmra.mxu0 %v1393
  %v1718 = vpop.f32.mrf.mxu0
  %v1719 = vadd.f32 %v1280, %v1718
  %v1720 = vpop.f32.mrf.mxu0
  %v1721 = vadd.f32 %v1284, %v1720
  %v1722 = vpop.f32.mrf.mxu0
  %v1723 = vadd.f32 %v1280, %v1722
  %v1724 = vpop.f32.mrf.mxu0
  %v1725 = vadd.f32 %v1284, %v1724
  %1726 = vmatprep.mubr.bf16.mxu0 0
  %1727 = vmatmul.mubr.bf16.gmra.mxu0 %v1396
  %v1728 = vpop.f32.mrf.mxu0
  %v1729 = vadd.f32 %v1280, %v1728
  %v1730 = vpop.f32.mrf.mxu0
  %v1731 = vadd.f32 %v1284, %v1730
  %v1732 = vpop.f32.mrf.mxu0
  %v1733 = vadd.f32 %v1280, %v1732
  %v1734 = vpop.f32.mrf.mxu0
  %v1735 = vadd.f32 %v1284, %v1734
  %1736 = vmatprep.mubr.bf16.mxu0 0
  %1737 = vmatmul.mubr.bf16.gmra.mxu0 %v1399
  %v1738 = vpop.f32.mrf.mxu0
  %v1739 = vadd.f32 %v1280, %v1738
  %v1740 = vpop.f32.mrf.mxu0
  %v1741 = vadd.f32 %v1284, %v1740
  %v1742 = vpop.f32.mrf.mxu0
  %v1743 = vadd.f32 %v1280, %v1742
  %v1744 = vpop.f32.mrf.mxu0
  %v1745 = vadd.f32 %v1284, %v1744
  %1746 = vmatprep.mubr.bf16.mxu0 0
  %1747 = vmatmul.mubr.bf16.gmra.mxu0 %v1402
  %v1748 = vpop.f32.mrf.mxu0
  %v1749 = vadd.f32 %v1280, %v1748
  %v1750 = vpop.f32.mrf.mxu0
  %v1751 = vadd.f32 %v1284, %v1750
  %v1752 = vpop.f32.mrf.mxu0
  %v1753 = vadd.f32 %v1280, %v1752
  %v1754 = vpop.f32.mrf.mxu0
  %v1755 = vadd.f32 %v1284, %v1754
  %1756 = vdwg.mxu0
  %v1757 = vmax.f32 %v1439, 0.0
  %v1758 = vmax.f32 %v1441, 0.0
  %v1759 = vmax.f32 %v1443, 0.0
  %v1760 = vmax.f32 %v1445, 0.0
  %v1761 = vmax.f32 %v1449, 0.0
  %v1762 = vmax.f32 %v1451, 0.0
  %v1763 = vmax.f32 %v1453, 0.0
  %v1764 = vmax.f32 %v1455, 0.0
  %v1765 = vmax.f32 %v1459, 0.0
  %v1766 = vmax.f32 %v1461, 0.0
  %v1767 = vmax.f32 %v1463, 0.0
  %v1768 = vmax.f32 %v1465, 0.0
  %v1769 = vmax.f32 %v1469, 0.0
  %v1770 = vmax.f32 %v1471, 0.0
  %v1771 = vmax.f32 %v1473, 0.0
  %v1772 = vmax.f32 %v1475, 0.0
  %v1773 = vmax.f32 %v1479, 0.0
  %v1774 = vmax.f32 %v1481, 0.0
  %v1775 = vmax.f32 %v1483, 0.0
  %v1776 = vmax.f32 %v1485, 0.0
  %v1777 = vmax.f32 %v1489, 0.0
  %v1778 = vmax.f32 %v1491, 0.0
  %v1779 = vmax.f32 %v1493, 0.0
  %v1780 = vmax.f32 %v1495, 0.0
  %v1781 = vmax.f32 %v1499, 0.0
  %v1782 = vmax.f32 %v1501, 0.0
  %v1783 = vmax.f32 %v1503, 0.0
  %v1784 = vmax.f32 %v1505, 0.0
  %v1785 = vmax.f32 %v1509, 0.0
  %v1786 = vmax.f32 %v1511, 0.0
  %v1787 = vmax.f32 %v1513, 0.0
  %v1788 = vmax.f32 %v1515, 0.0
  %v1789 = vmax.f32 %v1519, 0.0
  %v1790 = vmax.f32 %v1521, 0.0
  %v1791 = vmax.f32 %v1523, 0.0
  %v1792 = vmax.f32 %v1525, 0.0
  %v1793 = vmax.f32 %v1529, 0.0
  %v1794 = vmax.f32 %v1531, 0.0
  %v1795 = vmax.f32 %v1533, 0.0
  %v1796 = vmax.f32 %v1535, 0.0
  %v1797 = vmax.f32 %v1539, 0.0
  %v1798 = vmax.f32 %v1541, 0.0
  %v1799 = vmax.f32 %v1543, 0.0
  %v1800 = vmax.f32 %v1545, 0.0
  %v1801 = vmax.f32 %v1549, 0.0
  %v1802 = vmax.f32 %v1551, 0.0
  %v1803 = vmax.f32 %v1553, 0.0
  %v1804 = vmax.f32 %v1555, 0.0
  %v1805 = vmax.f32 %v1559, 0.0
  %v1806 = vmax.f32 %v1561, 0.0
  %v1807 = vmax.f32 %v1563, 0.0
  %v1808 = vmax.f32 %v1565, 0.0
  %v1809 = vmax.f32 %v1569, 0.0
  %v1810 = vmax.f32 %v1571, 0.0
  %v1811 = vmax.f32 %v1573, 0.0
  %v1812 = vmax.f32 %v1575, 0.0
  %v1813 = vmax.f32 %v1579, 0.0
  %v1814 = vmax.f32 %v1581, 0.0
  %v1815 = vmax.f32 %v1583, 0.0
  %v1816 = vmax.f32 %v1585, 0.0
  %v1817 = vmax.f32 %v1589, 0.0
  %v1818 = vmax.f32 %v1591, 0.0
  %v1819 = vmax.f32 %v1593, 0.0
  %v1820 = vmax.f32 %v1595, 0.0
  %v1821 = vmax.f32 %v1599, 0.0
  %v1822 = vmax.f32 %v1601, 0.0
  %v1823 = vmax.f32 %v1603, 0.0
  %v1824 = vmax.f32 %v1605, 0.0
  %v1825 = vmax.f32 %v1609, 0.0
  %v1826 = vmax.f32 %v1611, 0.0
  %v1827 = vmax.f32 %v1613, 0.0
  %v1828 = vmax.f32 %v1615, 0.0
  %v1829 = vmax.f32 %v1619, 0.0
  %v1830 = vmax.f32 %v1621, 0.0
  %v1831 = vmax.f32 %v1623, 0.0
  %v1832 = vmax.f32 %v1625, 0.0
  %v1833 = vmax.f32 %v1629, 0.0
  %v1834 = vmax.f32 %v1631, 0.0
  %v1835 = vmax.f32 %v1633, 0.0
  %v1836 = vmax.f32 %v1635, 0.0
  %v1837 = vmax.f32 %v1639, 0.0
  %v1838 = vmax.f32 %v1641, 0.0
  %v1839 = vmax.f32 %v1643, 0.0
  %v1840 = vmax.f32 %v1645, 0.0
  %v1841 = vmax.f32 %v1649, 0.0
  %v1842 = vmax.f32 %v1651, 0.0
  %v1843 = vmax.f32 %v1653, 0.0
  %v1844 = vmax.f32 %v1655, 0.0
  %v1845 = vmax.f32 %v1659, 0.0
  %v1846 = vmax.f32 %v1661, 0.0
  %v1847 = vmax.f32 %v1663, 0.0
  %v1848 = vmax.f32 %v1665, 0.0
  %v1849 = vmax.f32 %v1669, 0.0
  %v1850 = vmax.f32 %v1671, 0.0
  %v1851 = vmax.f32 %v1673, 0.0
  %v1852 = vmax.f32 %v1675, 0.0
  %v1853 = vmax.f32 %v1679, 0.0
  %v1854 = vmax.f32 %v1681, 0.0
  %v1855 = vmax.f32 %v1683, 0.0
  %v1856 = vmax.f32 %v1685, 0.0
  %v1857 = vmax.f32 %v1689, 0.0
  %v1858 = vmax.f32 %v1691, 0.0
  %v1859 = vmax.f32 %v1693, 0.0
  %v1860 = vmax.f32 %v1695, 0.0
  %v1861 = vmax.f32 %v1699, 0.0
  %v1862 = vmax.f32 %v1701, 0.0
  %v1863 = vmax.f32 %v1703, 0.0
  %v1864 = vmax.f32 %v1705, 0.0
  %v1865 = vmax.f32 %v1709, 0.0
  %v1866 = vmax.f32 %v1711, 0.0
  %v1867 = vmax.f32 %v1713, 0.0
  %v1868 = vmax.f32 %v1715, 0.0
  %v1869 = vmax.f32 %v1719, 0.0
  %v1870 = vmax.f32 %v1721, 0.0
  %v1871 = vmax.f32 %v1723, 0.0
  %v1872 = vmax.f32 %v1725, 0.0
  %v1873 = vmax.f32 %v1729, 0.0
  %v1874 = vmax.f32 %v1731, 0.0
  %v1875 = vmax.f32 %v1733, 0.0
  %v1876 = vmax.f32 %v1735, 0.0
  %v1877 = vmax.f32 %v1739, 0.0
  %v1878 = vmax.f32 %v1741, 0.0
  %v1879 = vmax.f32 %v1743, 0.0
  %v1880 = vmax.f32 %v1745, 0.0
  %v1881 = vmax.f32 %v1749, 0.0
  %v1882 = vmax.f32 %v1751, 0.0
  %v1883 = vmax.f32 %v1753, 0.0
  %v1884 = vmax.f32 %v1755, 0.0
  %v1885 = vpack.c.bf16 %v1759, %v1757
  %v1886 = vpack.c.bf16 %v1760, %v1758
  %v1887 = vpack.c.bf16 %v1763, %v1761
  %v1888 = vpack.c.bf16 %v1764, %v1762
  %v1889 = vpack.c.bf16 %v1767, %v1765
  %v1890 = vpack.c.bf16 %v1768, %v1766
  %v1891 = vpack.c.bf16 %v1771, %v1769
  %v1892 = vpack.c.bf16 %v1772, %v1770
  %v1893 = vpack.c.bf16 %v1775, %v1773
  %v1894 = vpack.c.bf16 %v1776, %v1774
  %v1895 = vpack.c.bf16 %v1779, %v1777
  %v1896 = vpack.c.bf16 %v1780, %v1778
  %v1897 = vpack.c.bf16 %v1783, %v1781
  %v1898 = vpack.c.bf16 %v1784, %v1782
  %v1899 = vpack.c.bf16 %v1787, %v1785
  %v1900 = vpack.c.bf16 %v1788, %v1786
  %v1901 = vpack.c.bf16 %v1791, %v1789
  %v1902 = vpack.c.bf16 %v1792, %v1790
  %v1903 = vpack.c.bf16 %v1795, %v1793
  %v1904 = vpack.c.bf16 %v1796, %v1794
  %v1905 = vpack.c.bf16 %v1799, %v1797
  %v1906 = vpack.c.bf16 %v1800, %v1798
  %v1907 = vpack.c.bf16 %v1803, %v1801
  %v1908 = vpack.c.bf16 %v1804, %v1802
  %v1909 = vpack.c.bf16 %v1807, %v1805
  %v1910 = vpack.c.bf16 %v1808, %v1806
  %v1911 = vpack.c.bf16 %v1811, %v1809
  %v1912 = vpack.c.bf16 %v1812, %v1810
  %v1913 = vpack.c.bf16 %v1815, %v1813
  %v1914 = vpack.c.bf16 %v1816, %v1814
  %v1915 = vpack.c.bf16 %v1819, %v1817
  %v1916 = vpack.c.bf16 %v1820, %v1818
  %v1917 = vpack.c.bf16 %v1823, %v1821
  %v1918 = vpack.c.bf16 %v1824, %v1822
  %v1919 = vpack.c.bf16 %v1827, %v1825
  %v1920 = vpack.c.bf16 %v1828, %v1826
  %v1921 = vpack.c.bf16 %v1831, %v1829
  %v1922 = vpack.c.bf16 %v1832, %v1830
  %v1923 = vpack.c.bf16 %v1835, %v1833
  %v1924 = vpack.c.bf16 %v1836, %v1834
  %v1925 = vpack.c.bf16 %v1839, %v1837
  %v1926 = vpack.c.bf16 %v1840, %v1838
  %v1927 = vpack.c.bf16 %v1843, %v1841
  %v1928 = vpack.c.bf16 %v1844, %v1842
  %v1929 = vpack.c.bf16 %v1847, %v1845
  %v1930 = vpack.c.bf16 %v1848, %v1846
  %v1931 = vpack.c.bf16 %v1851, %v1849
  %v1932 = vpack.c.bf16 %v1852, %v1850
  %v1933 = vpack.c.bf16 %v1855, %v1853
  %v1934 = vpack.c.bf16 %v1856, %v1854
  %v1935 = vpack.c.bf16 %v1859, %v1857
  %v1936 = vpack.c.bf16 %v1860, %v1858
  %v1937 = vpack.c.bf16 %v1863, %v1861
  %v1938 = vpack.c.bf16 %v1864, %v1862
  %v1939 = vpack.c.bf16 %v1867, %v1865
  %v1940 = vpack.c.bf16 %v1868, %v1866
  %v1941 = vpack.c.bf16 %v1871, %v1869
  %v1942 = vpack.c.bf16 %v1872, %v1870
  %v1943 = vpack.c.bf16 %v1875, %v1873
  %v1944 = vpack.c.bf16 %v1876, %v1874
  %v1945 = vpack.c.bf16 %v1879, %v1877
  %v1946 = vpack.c.bf16 %v1880, %v1878
  %v1947 = vpack.c.bf16 %v1883, %v1881
  %v1948 = vpack.c.bf16 %v1884, %v1882
  %v1949 = vld [vmem:[%s3] sm:$0xf]
  %v1950 = vld [vmem:[%s3 + $0x4] sm:$0xf]
  %v1951 = vld [vmem:[%s3 + $0x8] sm:$0xf]
  %v1952 = vld [vmem:[%s3 + $0xc] sm:$0xf]
  %v1953 = vld [vmem:[%s3 + $0x10] sm:$0xf]
  %v1954 = vld [vmem:[%s3 + $0x14] sm:$0xf]
  %v1955 = vld [vmem:[%s3 + $0x18] sm:$0xf]
  %v1956 = vld [vmem:[%s3 + $0x1c] sm:$0xf]
  %v1957 = vld [vmem:[%s3 + $0x20] sm:$0xf]
  %v1958 = vld [vmem:[%s3 + $0x24] sm:$0xf]
  %v1959 = vld [vmem:[%s3 + $0x28] sm:$0xf]
  %v1960 = vld [vmem:[%s3 + $0x2c] sm:$0xf]
  %v1961 = vld [vmem:[%s3 + $0x30] sm:$0xf]
  %v1962 = vld [vmem:[%s3 + $0x34] sm:$0xf]
  %v1963 = vld [vmem:[%s3 + $0x38] sm:$0xf]
  %v1964 = vld [vmem:[%s3 + $0x3c] sm:$0xf]
  %v1965 = vld [vmem:[%s3 + $0x40] sm:$0xf]
  %v1966 = vld [vmem:[%s3 + $0x44] sm:$0xf]
  %v1967 = vld [vmem:[%s3 + $0x48] sm:$0xf]
  %v1968 = vld [vmem:[%s3 + $0x4c] sm:$0xf]
  %v1969 = vld [vmem:[%s3 + $0x50] sm:$0xf]
  %v1970 = vld [vmem:[%s3 + $0x54] sm:$0xf]
  %v1971 = vld [vmem:[%s3 + $0x58] sm:$0xf]
  %v1972 = vld [vmem:[%s3 + $0x5c] sm:$0xf]
  %v1973 = vld [vmem:[%s3 + $0x60] sm:$0xf]
  %v1974 = vld [vmem:[%s3 + $0x64] sm:$0xf]
  %v1975 = vld [vmem:[%s3 + $0x68] sm:$0xf]
  %v1976 = vld [vmem:[%s3 + $0x6c] sm:$0xf]
  %v1977 = vld [vmem:[%s3 + $0x70] sm:$0xf]
  %v1978 = vld [vmem:[%s3 + $0x74] sm:$0xf]
  %v1979 = vld [vmem:[%s3 + $0x78] sm:$0xf]
  %v1980 = vld [vmem:[%s3 + $0x7c] sm:$0xf]
  %v1981 = vld [vmem:[%s4] sm:$0x1]
  %v1983 = vlaneseq
  %v1984 = vshrl.u32 %v1983, 7
  %v1985 = vsub.s32 0, %v1984
  %v1986 = vrot.slane %v1981, %v1985
  %v2020 = vunpack.c.l.b16 %v1949
  %v2021 = vunpack.c.l.b16 %v1950
  %v2022 = vunpack.c.l.b16 %v1951
  %v2023 = vunpack.c.l.b16 %v1952
  %v2024 = vunpack.c.l.b16 %v1953
  %v2025 = vunpack.c.l.b16 %v1954
  %v2026 = vunpack.c.l.b16 %v1955
  %v2027 = vunpack.c.l.b16 %v1956
  %v2028 = vunpack.c.l.b16 %v1957
  %v2029 = vunpack.c.l.b16 %v1958
  %v2030 = vunpack.c.l.b16 %v1959
  %v2031 = vunpack.c.l.b16 %v1960
  %v2032 = vunpack.c.l.b16 %v1961
  %v2033 = vunpack.c.l.b16 %v1962
  %v2034 = vunpack.c.l.b16 %v1963
  %v2035 = vunpack.c.l.b16 %v1964
  %v2036 = vunpack.c.l.b16 %v1965
  %v2037 = vunpack.c.l.b16 %v1966
  %v2038 = vunpack.c.l.b16 %v1967
  %v2039 = vunpack.c.l.b16 %v1968
  %v2040 = vunpack.c.l.b16 %v1969
  %v2041 = vunpack.c.l.b16 %v1970
  %v2042 = vunpack.c.l.b16 %v1971
  %v2043 = vunpack.c.l.b16 %v1972
  %v2044 = vunpack.c.l.b16 %v1973
  %v2045 = vunpack.c.l.b16 %v1974
  %v2046 = vunpack.c.l.b16 %v1975
  %v2047 = vunpack.c.l.b16 %v1976
  %v2048 = vunpack.c.l.b16 %v1977
  %v2049 = vunpack.c.l.b16 %v1978
  %v2050 = vunpack.c.l.b16 %v1979
  %v2051 = vunpack.c.l.b16 %v1980
  %v2052 = vpack.c.b16 %v2021, %v2020
  %v2053 = vpack.c.b16 %v2023, %v2022
  %v2054 = vpack.c.b16 %v2025, %v2024
  %v2055 = vpack.c.b16 %v2027, %v2026
  %v2056 = vpack.c.b16 %v2029, %v2028
  %v2057 = vpack.c.b16 %v2031, %v2030
  %v2058 = vpack.c.b16 %v2033, %v2032
  %v2059 = vpack.c.b16 %v2035, %v2034
  %v2060 = vpack.c.b16 %v2037, %v2036
  %v2061 = vpack.c.b16 %v2039, %v2038
  %v2062 = vpack.c.b16 %v2041, %v2040
  %v2063 = vpack.c.b16 %v2043, %v2042
  %v2064 = vpack.c.b16 %v2045, %v2044
  %v2065 = vpack.c.b16 %v2047, %v2046
  %v2066 = vpack.c.b16 %v2049, %v2048
  %v2067 = vpack.c.b16 %v2051, %v2050
  %2084 = vmatprep.subr.bf16.mxu0 0
  %2085 = vmatpush1.bf16.msra.mxu0 %v2059
  %2086 = vmatprep.subr.bf16.mxu0 0
  %2087 = vmatpush1.bf16.msra.mxu0 %v2058
  %2088 = vmatprep.subr.bf16.mxu0 0
  %2089 = vmatpush1.bf16.msra.mxu0 %v2057
  %2090 = vmatprep.subr.bf16.mxu0 0
  %2091 = vmatpush1.bf16.msra.mxu0 %v2056
  %2092 = vmatprep.subr.bf16.mxu0 0
  %2093 = vmatpush1.bf16.msra.mxu0 %v2055
  %2094 = vmatprep.subr.bf16.mxu0 0
  %2095 = vmatpush1.bf16.msra.mxu0 %v2054
  %2096 = vmatprep.subr.bf16.mxu0 0
  %2097 = vmatpush1.bf16.msra.mxu0 %v2053
  %2098 = vmatprep.subr.bf16.mxu0 0
  %2099 = vmatpush1.bf16.msra.mxu0 %v2052
  %2100 = vmatprep.subr.bf16.mxu0 0
  %2101 = vmatpush2.bf16.msra.mxu0 %v2067
  %2102 = vmatprep.subr.bf16.mxu0 0
  %2103 = vmatpush2.bf16.msra.mxu0 %v2066
  %2104 = vmatprep.subr.bf16.mxu0 0
  %2105 = vmatpush2.bf16.msra.mxu0 %v2065
  %2106 = vmatprep.subr.bf16.mxu0 0
  %2107 = vmatpush2.bf16.msra.mxu0 %v2064
  %2108 = vmatprep.subr.bf16.mxu0 0
  %2109 = vmatpush2.bf16.msra.mxu0 %v2063
  %2110 = vmatprep.subr.bf16.mxu0 0
  %2111 = vmatpush2.bf16.msra.mxu0 %v2062
  %2112 = vmatprep.subr.bf16.mxu0 0
  %2113 = vmatpush2.bf16.msra.mxu0 %v2061
  %2114 = vmatprep.subr.bf16.mxu0 0
  %2115 = vmatpush2.bf16.msra.mxu0 %v2060
  %2116 = vmatprep.mubr.bf16.mxu0 %v1886
  %2117 = vmatmul.mubr.bf16.gmra.mxu0 %v1885
  %v2118 = vpop.f32.mrf.mxu0
  %v2119 = vadd.f32 %v1986, %v2118
  %v2120 = vpop.f32.mrf.mxu0
  %v2121 = vpop.f32.mrf.mxu0
  %v2122 = vadd.f32 %v1986, %v2121
  %v2123 = vpop.f32.mrf.mxu0
  %2124 = vmatprep.mubr.bf16.mxu0 %v1888
  %2125 = vmatmul.mubr.bf16.gmra.mxu0 %v1887
  %v2126 = vpop.f32.mrf.mxu0
  %v2127 = vadd.f32 %v1986, %v2126
  %v2128 = vpop.f32.mrf.mxu0
  %v2129 = vpop.f32.mrf.mxu0
  %v2130 = vadd.f32 %v1986, %v2129
  %v2131 = vpop.f32.mrf.mxu0
  %2132 = vmatprep.mubr.bf16.mxu0 %v1890
  %2133 = vmatmul.mubr.bf16.gmra.mxu0 %v1889
  %v2134 = vpop.f32.mrf.mxu0
  %v2135 = vadd.f32 %v1986, %v2134
  %v2136 = vpop.f32.mrf.mxu0
  %v2137 = vpop.f32.mrf.mxu0
  %v2138 = vadd.f32 %v1986, %v2137
  %v2139 = vpop.f32.mrf.mxu0
  %2140 = vmatprep.mubr.bf16.mxu0 %v1892
  %2141 = vmatmul.mubr.bf16.gmra.mxu0 %v1891
  %v2142 = vpop.f32.mrf.mxu0
  %v2143 = vadd.f32 %v1986, %v2142
  %v2144 = vpop.f32.mrf.mxu0
  %v2145 = vpop.f32.mrf.mxu0
  %v2146 = vadd.f32 %v1986, %v2145
  %v2147 = vpop.f32.mrf.mxu0
  %2148 = vmatprep.mubr.bf16.mxu0 %v1894
  %2149 = vmatmul.mubr.bf16.gmra.mxu0 %v1893
  %v2150 = vpop.f32.mrf.mxu0
  %v2151 = vadd.f32 %v1986, %v2150
  %v2152 = vpop.f32.mrf.mxu0
  %v2153 = vpop.f32.mrf.mxu0
  %v2154 = vadd.f32 %v1986, %v2153
  %v2155 = vpop.f32.mrf.mxu0
  %2156 = vmatprep.mubr.bf16.mxu0 %v1896
  %2157 = vmatmul.mubr.bf16.gmra.mxu0 %v1895
  %v2158 = vpop.f32.mrf.mxu0
  %v2159 = vadd.f32 %v1986, %v2158
  %v2160 = vpop.f32.mrf.mxu0
  %v2161 = vpop.f32.mrf.mxu0
  %v2162 = vadd.f32 %v1986, %v2161
  %v2163 = vpop.f32.mrf.mxu0
  %2164 = vmatprep.mubr.bf16.mxu0 %v1898
  %2165 = vmatmul.mubr.bf16.gmra.mxu0 %v1897
  %v2166 = vpop.f32.mrf.mxu0
  %v2167 = vadd.f32 %v1986, %v2166
  %v2168 = vpop.f32.mrf.mxu0
  %v2169 = vpop.f32.mrf.mxu0
  %v2170 = vadd.f32 %v1986, %v2169
  %v2171 = vpop.f32.mrf.mxu0
  %2172 = vmatprep.mubr.bf16.mxu0 %v1900
  %2173 = vmatmul.mubr.bf16.gmra.mxu0 %v1899
  %v2174 = vpop.f32.mrf.mxu0
  %v2175 = vadd.f32 %v1986, %v2174
  %v2176 = vpop.f32.mrf.mxu0
  %v2177 = vpop.f32.mrf.mxu0
  %v2178 = vadd.f32 %v1986, %v2177
  %v2179 = vpop.f32.mrf.mxu0
  %2180 = vmatprep.mubr.bf16.mxu0 %v1902
  %2181 = vmatmul.mubr.bf16.gmra.mxu0 %v1901
  %v2182 = vpop.f32.mrf.mxu0
  %v2183 = vadd.f32 %v1986, %v2182
  %v2184 = vpop.f32.mrf.mxu0
  %v2185 = vpop.f32.mrf.mxu0
  %v2186 = vadd.f32 %v1986, %v2185
  %v2187 = vpop.f32.mrf.mxu0
  %2188 = vmatprep.mubr.bf16.mxu0 %v1904
  %2189 = vmatmul.mubr.bf16.gmra.mxu0 %v1903
  %v2190 = vpop.f32.mrf.mxu0
  %v2191 = vadd.f32 %v1986, %v2190
  %v2192 = vpop.f32.mrf.mxu0
  %v2193 = vpop.f32.mrf.mxu0
  %v2194 = vadd.f32 %v1986, %v2193
  %v2195 = vpop.f32.mrf.mxu0
  %2196 = vmatprep.mubr.bf16.mxu0 %v1906
  %2197 = vmatmul.mubr.bf16.gmra.mxu0 %v1905
  %v2198 = vpop.f32.mrf.mxu0
  %v2199 = vadd.f32 %v1986, %v2198
  %v2200 = vpop.f32.mrf.mxu0
  %v2201 = vpop.f32.mrf.mxu0
  %v2202 = vadd.f32 %v1986, %v2201
  %v2203 = vpop.f32.mrf.mxu0
  %2204 = vmatprep.mubr.bf16.mxu0 %v1908
  %2205 = vmatmul.mubr.bf16.gmra.mxu0 %v1907
  %v2206 = vpop.f32.mrf.mxu0
  %v2207 = vadd.f32 %v1986, %v2206
  %v2208 = vpop.f32.mrf.mxu0
  %v2209 = vpop.f32.mrf.mxu0
  %v2210 = vadd.f32 %v1986, %v2209
  %v2211 = vpop.f32.mrf.mxu0
  %2212 = vmatprep.mubr.bf16.mxu0 %v1910
  %2213 = vmatmul.mubr.bf16.gmra.mxu0 %v1909
  %v2214 = vpop.f32.mrf.mxu0
  %v2215 = vadd.f32 %v1986, %v2214
  %v2216 = vpop.f32.mrf.mxu0
  %v2217 = vpop.f32.mrf.mxu0
  %v2218 = vadd.f32 %v1986, %v2217
  %v2219 = vpop.f32.mrf.mxu0
  %2220 = vmatprep.mubr.bf16.mxu0 %v1912
  %2221 = vmatmul.mubr.bf16.gmra.mxu0 %v1911
  %v2222 = vpop.f32.mrf.mxu0
  %v2223 = vadd.f32 %v1986, %v2222
  %v2224 = vpop.f32.mrf.mxu0
  %v2225 = vpop.f32.mrf.mxu0
  %v2226 = vadd.f32 %v1986, %v2225
  %v2227 = vpop.f32.mrf.mxu0
  %2228 = vmatprep.mubr.bf16.mxu0 %v1914
  %2229 = vmatmul.mubr.bf16.gmra.mxu0 %v1913
  %v2230 = vpop.f32.mrf.mxu0
  %v2231 = vadd.f32 %v1986, %v2230
  %v2232 = vpop.f32.mrf.mxu0
  %v2233 = vpop.f32.mrf.mxu0
  %v2234 = vadd.f32 %v1986, %v2233
  %v2235 = vpop.f32.mrf.mxu0
  %2236 = vmatprep.mubr.bf16.mxu0 %v1916
  %2237 = vmatmul.mubr.bf16.gmra.mxu0 %v1915
  %v2238 = vpop.f32.mrf.mxu0
  %v2239 = vadd.f32 %v1986, %v2238
  %v2240 = vpop.f32.mrf.mxu0
  %v2241 = vpop.f32.mrf.mxu0
  %v2242 = vadd.f32 %v1986, %v2241
  %v2243 = vpop.f32.mrf.mxu0
  %2244 = vmatprep.mubr.bf16.mxu0 %v1918
  %2245 = vmatmul.mubr.bf16.gmra.mxu0 %v1917
  %v2246 = vpop.f32.mrf.mxu0
  %v2247 = vadd.f32 %v1986, %v2246
  %v2248 = vpop.f32.mrf.mxu0
  %v2249 = vpop.f32.mrf.mxu0
  %v2250 = vadd.f32 %v1986, %v2249
  %v2251 = vpop.f32.mrf.mxu0
  %2252 = vmatprep.mubr.bf16.mxu0 %v1920
  %2253 = vmatmul.mubr.bf16.gmra.mxu0 %v1919
  %v2254 = vpop.f32.mrf.mxu0
  %v2255 = vadd.f32 %v1986, %v2254
  %v2256 = vpop.f32.mrf.mxu0
  %v2257 = vpop.f32.mrf.mxu0
  %v2258 = vadd.f32 %v1986, %v2257
  %v2259 = vpop.f32.mrf.mxu0
  %2260 = vmatprep.mubr.bf16.mxu0 %v1922
  %2261 = vmatmul.mubr.bf16.gmra.mxu0 %v1921
  %v2262 = vpop.f32.mrf.mxu0
  %v2263 = vadd.f32 %v1986, %v2262
  %v2264 = vpop.f32.mrf.mxu0
  %v2265 = vpop.f32.mrf.mxu0
  %v2266 = vadd.f32 %v1986, %v2265
  %v2267 = vpop.f32.mrf.mxu0
  %2268 = vmatprep.mubr.bf16.mxu0 %v1924
  %2269 = vmatmul.mubr.bf16.gmra.mxu0 %v1923
  %v2270 = vpop.f32.mrf.mxu0
  %v2271 = vadd.f32 %v1986, %v2270
  %v2272 = vpop.f32.mrf.mxu0
  %v2273 = vpop.f32.mrf.mxu0
  %v2274 = vadd.f32 %v1986, %v2273
  %v2275 = vpop.f32.mrf.mxu0
  %2276 = vmatprep.mubr.bf16.mxu0 %v1926
  %2277 = vmatmul.mubr.bf16.gmra.mxu0 %v1925
  %v2278 = vpop.f32.mrf.mxu0
  %v2279 = vadd.f32 %v1986, %v2278
  %v2280 = vpop.f32.mrf.mxu0
  %v2281 = vpop.f32.mrf.mxu0
  %v2282 = vadd.f32 %v1986, %v2281
  %v2283 = vpop.f32.mrf.mxu0
  %2284 = vmatprep.mubr.bf16.mxu0 %v1928
  %2285 = vmatmul.mubr.bf16.gmra.mxu0 %v1927
  %v2286 = vpop.f32.mrf.mxu0
  %v2287 = vadd.f32 %v1986, %v2286
  %v2288 = vpop.f32.mrf.mxu0
  %v2289 = vpop.f32.mrf.mxu0
  %v2290 = vadd.f32 %v1986, %v2289
  %v2291 = vpop.f32.mrf.mxu0
  %2292 = vmatprep.mubr.bf16.mxu0 %v1930
  %2293 = vmatmul.mubr.bf16.gmra.mxu0 %v1929
  %v2294 = vpop.f32.mrf.mxu0
  %v2295 = vadd.f32 %v1986, %v2294
  %v2296 = vpop.f32.mrf.mxu0
  %v2297 = vpop.f32.mrf.mxu0
  %v2298 = vadd.f32 %v1986, %v2297
  %v2299 = vpop.f32.mrf.mxu0
  %2300 = vmatprep.mubr.bf16.mxu0 %v1932
  %2301 = vmatmul.mubr.bf16.gmra.mxu0 %v1931
  %v2302 = vpop.f32.mrf.mxu0
  %v2303 = vadd.f32 %v1986, %v2302
  %v2304 = vpop.f32.mrf.mxu0
  %v2305 = vpop.f32.mrf.mxu0
  %v2306 = vadd.f32 %v1986, %v2305
  %v2307 = vpop.f32.mrf.mxu0
  %2308 = vmatprep.mubr.bf16.mxu0 %v1934
  %2309 = vmatmul.mubr.bf16.gmra.mxu0 %v1933
  %v2310 = vpop.f32.mrf.mxu0
  %v2311 = vadd.f32 %v1986, %v2310
  %v2312 = vpop.f32.mrf.mxu0
  %v2313 = vpop.f32.mrf.mxu0
  %v2314 = vadd.f32 %v1986, %v2313
  %v2315 = vpop.f32.mrf.mxu0
  %2316 = vmatprep.mubr.bf16.mxu0 %v1936
  %2317 = vmatmul.mubr.bf16.gmra.mxu0 %v1935
  %v2318 = vpop.f32.mrf.mxu0
  %v2319 = vadd.f32 %v1986, %v2318
  %v2320 = vpop.f32.mrf.mxu0
  %v2321 = vpop.f32.mrf.mxu0
  %v2322 = vadd.f32 %v1986, %v2321
  %v2323 = vpop.f32.mrf.mxu0
  %2324 = vmatprep.mubr.bf16.mxu0 %v1938
  %2325 = vmatmul.mubr.bf16.gmra.mxu0 %v1937
  %v2326 = vpop.f32.mrf.mxu0
  %v2327 = vadd.f32 %v1986, %v2326
  %v2328 = vpop.f32.mrf.mxu0
  %v2329 = vpop.f32.mrf.mxu0
  %v2330 = vadd.f32 %v1986, %v2329
  %v2331 = vpop.f32.mrf.mxu0
  %2332 = vmatprep.mubr.bf16.mxu0 %v1940
  %2333 = vmatmul.mubr.bf16.gmra.mxu0 %v1939
  %v2334 = vpop.f32.mrf.mxu0
  %v2335 = vadd.f32 %v1986, %v2334
  %v2336 = vpop.f32.mrf.mxu0
  %v2337 = vpop.f32.mrf.mxu0
  %v2338 = vadd.f32 %v1986, %v2337
  %v2339 = vpop.f32.mrf.mxu0
  %2340 = vmatprep.mubr.bf16.mxu0 %v1942
  %2341 = vmatmul.mubr.bf16.gmra.mxu0 %v1941
  %v2342 = vpop.f32.mrf.mxu0
  %v2343 = vadd.f32 %v1986, %v2342
  %v2344 = vpop.f32.mrf.mxu0
  %v2345 = vpop.f32.mrf.mxu0
  %v2346 = vadd.f32 %v1986, %v2345
  %v2347 = vpop.f32.mrf.mxu0
  %2348 = vmatprep.mubr.bf16.mxu0 %v1944
  %2349 = vmatmul.mubr.bf16.gmra.mxu0 %v1943
  %v2350 = vpop.f32.mrf.mxu0
  %v2351 = vadd.f32 %v1986, %v2350
  %v2352 = vpop.f32.mrf.mxu0
  %v2353 = vpop.f32.mrf.mxu0
  %v2354 = vadd.f32 %v1986, %v2353
  %v2355 = vpop.f32.mrf.mxu0
  %2356 = vmatprep.mubr.bf16.mxu0 %v1946
  %2357 = vmatmul.mubr.bf16.gmra.mxu0 %v1945
  %v2358 = vpop.f32.mrf.mxu0
  %v2359 = vadd.f32 %v1986, %v2358
  %v2360 = vpop.f32.mrf.mxu0
  %v2361 = vpop.f32.mrf.mxu0
  %v2362 = vadd.f32 %v1986, %v2361
  %v2363 = vpop.f32.mrf.mxu0
  %2364 = vmatprep.mubr.bf16.mxu0 %v1948
  %2365 = vmatmul.mubr.bf16.gmra.mxu0 %v1947
  %v2366 = vpop.f32.mrf.mxu0
  %v2367 = vadd.f32 %v1986, %v2366
  %v2368 = vpop.f32.mrf.mxu0
  %v2369 = vpop.f32.mrf.mxu0
  %v2370 = vadd.f32 %v1986, %v2369
  %v2371 = vpop.f32.mrf.mxu0
  %2372 = vdwg.mxu0
  %vm2373 = vcmask 523264
  %2374 = vst.msk [vmem:[%s5] sm:$0xff] %vm2373, %v2119
  %2375 = vst.msk [vmem:[%s5 + $0x8] sm:$0xff] %vm2373, %v2122
  %2376 = vst.msk [vmem:[%s5 + $0x10] sm:$0xff] %vm2373, %v2127
  %2377 = vst.msk [vmem:[%s5 + $0x18] sm:$0xff] %vm2373, %v2130
  %2378 = vst.msk [vmem:[%s5 + $0x20] sm:$0xff] %vm2373, %v2135
  %2379 = vst.msk [vmem:[%s5 + $0x28] sm:$0xff] %vm2373, %v2138
  %2380 = vst.msk [vmem:[%s5 + $0x30] sm:$0xff] %vm2373, %v2143
  %2381 = vst.msk [vmem:[%s5 + $0x38] sm:$0xff] %vm2373, %v2146
  %2382 = vst.msk [vmem:[%s5 + $0x40] sm:$0xff] %vm2373, %v2151
  %2383 = vst.msk [vmem:[%s5 + $0x48] sm:$0xff] %vm2373, %v2154
  %2384 = vst.msk [vmem:[%s5 + $0x50] sm:$0xff] %vm2373, %v2159
  %2385 = vst.msk [vmem:[%s5 + $0x58] sm:$0xff] %vm2373, %v2162
  %2386 = vst.msk [vmem:[%s5 + $0x60] sm:$0xff] %vm2373, %v2167
  %2387 = vst.msk [vmem:[%s5 + $0x68] sm:$0xff] %vm2373, %v2170
  %2388 = vst.msk [vmem:[%s5 + $0x70] sm:$0xff] %vm2373, %v2175
  %2389 = vst.msk [vmem:[%s5 + $0x78] sm:$0xff] %vm2373, %v2178
  %2390 = vst.msk [vmem:[%s5 + $0x80] sm:$0xff] %vm2373, %v2183
  %2391 = vst.msk [vmem:[%s5 + $0x88] sm:$0xff] %vm2373, %v2186
  %2392 = vst.msk [vmem:[%s5 + $0x90] sm:$0xff] %vm2373, %v2191
  %2393 = vst.msk [vmem:[%s5 + $0x98] sm:$0xff] %vm2373, %v2194
  %2394 = vst.msk [vmem:[%s5 + $0xa0] sm:$0xff] %vm2373, %v2199
  %2395 = vst.msk [vmem:[%s5 + $0xa8] sm:$0xff] %vm2373, %v2202
  %2396 = vst.msk [vmem:[%s5 + $0xb0] sm:$0xff] %vm2373, %v2207
  %2397 = vst.msk [vmem:[%s5 + $0xb8] sm:$0xff] %vm2373, %v2210
  %2398 = vst.msk [vmem:[%s5 + $0xc0] sm:$0xff] %vm2373, %v2215
  %2399 = vst.msk [vmem:[%s5 + $0xc8] sm:$0xff] %vm2373, %v2218
  %2400 = vst.msk [vmem:[%s5 + $0xd0] sm:$0xff] %vm2373, %v2223
  %2401 = vst.msk [vmem:[%s5 + $0xd8] sm:$0xff] %vm2373, %v2226
  %2402 = vst.msk [vmem:[%s5 + $0xe0] sm:$0xff] %vm2373, %v2231
  %2403 = vst.msk [vmem:[%s5 + $0xe8] sm:$0xff] %vm2373, %v2234
  %2404 = vst.msk [vmem:[%s5 + $0xf0] sm:$0xff] %vm2373, %v2239
  %2405 = vst.msk [vmem:[%s5 + $0xf8] sm:$0xff] %vm2373, %v2242
  %2406 = vst.msk [vmem:[%s5 + $0x100] sm:$0xff] %vm2373, %v2247
  %2407 = vst.msk [vmem:[%s5 + $0x108] sm:$0xff] %vm2373, %v2250
  %2408 = vst.msk [vmem:[%s5 + $0x110] sm:$0xff] %vm2373, %v2255
  %2409 = vst.msk [vmem:[%s5 + $0x118] sm:$0xff] %vm2373, %v2258
  %2410 = vst.msk [vmem:[%s5 + $0x120] sm:$0xff] %vm2373, %v2263
  %2411 = vst.msk [vmem:[%s5 + $0x128] sm:$0xff] %vm2373, %v2266
  %2412 = vst.msk [vmem:[%s5 + $0x130] sm:$0xff] %vm2373, %v2271
  %2413 = vst.msk [vmem:[%s5 + $0x138] sm:$0xff] %vm2373, %v2274
  %2414 = vst.msk [vmem:[%s5 + $0x140] sm:$0xff] %vm2373, %v2279
  %2415 = vst.msk [vmem:[%s5 + $0x148] sm:$0xff] %vm2373, %v2282
  %2416 = vst.msk [vmem:[%s5 + $0x150] sm:$0xff] %vm2373, %v2287
  %2417 = vst.msk [vmem:[%s5 + $0x158] sm:$0xff] %vm2373, %v2290
  %2418 = vst.msk [vmem:[%s5 + $0x160] sm:$0xff] %vm2373, %v2295
  %2419 = vst.msk [vmem:[%s5 + $0x168] sm:$0xff] %vm2373, %v2298
  %2420 = vst.msk [vmem:[%s5 + $0x170] sm:$0xff] %vm2373, %v2303
  %2421 = vst.msk [vmem:[%s5 + $0x178] sm:$0xff] %vm2373, %v2306
  %2422 = vst.msk [vmem:[%s5 + $0x180] sm:$0xff] %vm2373, %v2311
  %2423 = vst.msk [vmem:[%s5 + $0x188] sm:$0xff] %vm2373, %v2314
  %2424 = vst.msk [vmem:[%s5 + $0x190] sm:$0xff] %vm2373, %v2319
  %2425 = vst.msk [vmem:[%s5 + $0x198] sm:$0xff] %vm2373, %v2322
  %2426 = vst.msk [vmem:[%s5 + $0x1a0] sm:$0xff] %vm2373, %v2327
  %2427 = vst.msk [vmem:[%s5 + $0x1a8] sm:$0xff] %vm2373, %v2330
  %2428 = vst.msk [vmem:[%s5 + $0x1b0] sm:$0xff] %vm2373, %v2335
  %2429 = vst.msk [vmem:[%s5 + $0x1b8] sm:$0xff] %vm2373, %v2338
  %2430 = vst.msk [vmem:[%s5 + $0x1c0] sm:$0xff] %vm2373, %v2343
  %2431 = vst.msk [vmem:[%s5 + $0x1c8] sm:$0xff] %vm2373, %v2346
  %2432 = vst.msk [vmem:[%s5 + $0x1d0] sm:$0xff] %vm2373, %v2351
  %2433 = vst.msk [vmem:[%s5 + $0x1d8] sm:$0xff] %vm2373, %v2354
  %2434 = vst.msk [vmem:[%s5 + $0x1e0] sm:$0xff] %vm2373, %v2359
  %2435 = vst.msk [vmem:[%s5 + $0x1e8] sm:$0xff] %vm2373, %v2362
  %2436 = vst.msk [vmem:[%s5 + $0x1f0] sm:$0xff] %vm2373, %v2367
  %2437 = vst.msk [vmem:[%s5 + $0x1f8] sm:$0xff] %vm2373, %v2370
  // Predicated region
  $region22: #{grid_encoder.1} parent=0 // pred_check
    _
  $region23: #{grid_encoder.1} parent=0 // pred_check_branch
    %2439 = sbr.rel (0) target = $region25
  $region24: #{grid_encoder.1} parent=0 // pred_region
    _
  $region25: #{grid_encoder.1} parent=0 // pred_fallthru
    _
  // Predicated region
  $region26: #{grid_encoder.1} parent=0 // pred_check
    _
  $region27: #{grid_encoder.1} parent=0 // pred_check_branch
    %2441 = sbr.rel (0) target = $region29
  $region28: #{grid_encoder.1} parent=0 // pred_region
    _
  $region29: #{grid_encoder.1} parent=0 // pred_fallthru
    _

</llo_original>
